<compile_context>
chip_gen: v7x
topology: tpu7x:2x2x1
jax: 0.10.0
libtpu: 0.0.40
codegen_flags: <defaults>
</compile_context>

<pallas_src>
import functools

import jax
import jax.numpy as jnp
from jax.experimental import pallas as pl
from jax.experimental.pallas import tpu as pltpu


def _mha_kernel(x_ref, gamma_ref, beta_ref,
                wq_ref, wkv_ref, wo_ref,
                bq_ref, bkv_ref, bo_ref,
                o_ref,
                xln_scr, k_scr, v_scr,
                *, num_heads, head_dim, q_tile):
    """One grid step = (batch element, query tile).

    q == 0 step:  LayerNorm over the full sequence (f32 stats), packed K/V
                  projection (bf16 MXU, f32 acc), results cached in VMEM scratch.
    every step:   Q projection for the tile, per-head softmax attention against
                  the cached K/V, one full-depth output projection.
    """
    E = num_heads * head_dim
    qidx = pl.program_id(1)

    dn_wt = (((1,), (1,)), ((), ()))      # x @ W^T without materializing W^T

    @pl.when(qidx == 0)
    def _():
        x = x_ref[0].astype(jnp.float32)                      # (S, E)
        mu = jnp.mean(x, axis=-1, keepdims=True)
        xc = x - mu
        var = jnp.mean(xc * xc, axis=-1, keepdims=True)       # eps=1e-5, biased var
        xln = xc * jax.lax.rsqrt(var + 1e-5) * gamma_ref[...] + beta_ref[...]
        xln_bf = xln.astype(jnp.bfloat16)
        xln_scr[...] = xln_bf                                  # cached for Q tiles

        # One packed (S, E) x (E, 2E) MXU matmul for K and V, fused bias add.
        kv = jax.lax.dot_general(xln_bf, wkv_ref[...], dn_wt,
                                 preferred_element_type=jnp.float32) + bkv_ref[...]
        kv_bf = kv.astype(jnp.bfloat16)                        # (S, 2E)

        # Head-major caches: per-head reads in the attention loop are free
        # leading-index slices (lane slicing happens once per batch, here).
        for h in range(num_heads):
            lo = h * head_dim
            k_scr[h] = kv_bf[:, lo:lo + head_dim]
            v_scr[h] = kv_bf[:, E + lo:E + lo + head_dim]

    # ---- per-tile work -------------------------------------------------------
    row0 = pl.multiple_of(qidx * q_tile, q_tile)
    xq = xln_scr[pl.ds(row0, q_tile), :]                       # (tq, E) bf16

    # Q projection; Wq / bq are pre-scaled by 1/sqrt(D) at prepare time.
    q = jax.lax.dot_general(xq, wq_ref[...], dn_wt,
                            preferred_element_type=jnp.float32) + bq_ref[...]

    # TODO(synk): for num_heads >= 8 switch this unrolled loop to lax.fori_loop
    # over heads to bound code size / vreg live ranges.
    # TODO(synk): for very long S replace the full (tq, S) score tile with an
    # online-softmax (flash) loop over KV tiles of the cached K/V scratch.
    # TODO(synk): on v6e/v7x the exp below could run in bf16 (f32 max/row-sum
    # kept) for EUP throughput; kept f32 here for parity with the reference.
    head_outs = []
    for h in range(num_heads):
        lo = h * head_dim
        qs = q[:, lo:lo + head_dim].astype(jnp.bfloat16)       # (tq, D)
        ks = k_scr[h]                                          # (S,  D) bf16, free slice
        vs = v_scr[h]                                          # (S,  D) bf16

        # scores = qs @ ks^T without materializing a transpose.
        s = jax.lax.dot_general(qs, ks, (((1,), (1,)), ((), ())),
                                preferred_element_type=jnp.float32)   # (tq, S)

        m = jnp.max(s, axis=-1, keepdims=True)                 # f32 softmax stats
        p = jnp.exp(s - m)
        inv = pl.reciprocal(jnp.sum(p, axis=-1, keepdims=True), approx=True)

        o_h = jnp.dot(p.astype(jnp.bfloat16), vs,
                      preferred_element_type=jnp.float32) * inv       # (tq, D)
        head_outs.append(o_h.astype(jnp.bfloat16))

    attn = jnp.concatenate(head_outs, axis=-1)                 # (tq, E) bf16
    # Single full-depth output projection (better MXU fill than per-head folds).
    out = jax.lax.dot_general(attn, wo_ref[...], dn_wt,
                              preferred_element_type=jnp.float32) + bo_ref[...]
    o_ref[0] = out.astype(o_ref.dtype)


def _tpu_generation_hints():
    """Chip-aware (max query tile, VMEM clamp in bytes)."""
    max_tile = 256
    vmem_cap = 100 * 1024 * 1024          # v5e/v6e: 128 MiB parts
    kind = ""
    try:
        kind = jax.devices()[0].device_kind.lower()
    except Exception:
        pass
    if "v5 lite" in kind or "v5e" in kind:
        max_tile = 128                    # match the 4x128x128 MXU
    if "v7" in kind:
        max_tile = 128                    # keep the (tq, S) score tile small
        vmem_cap = 56 * 1024 * 1024       # 64 MiB per core minus headroom
    try:
        cap = int(pltpu.get_tpu_info().vmem_capacity_bytes)
        vmem_cap = min(vmem_cap, max(cap - 8 * 1024 * 1024, 48 * 1024 * 1024))
    except Exception:
        pass
    return max_tile, vmem_cap


def _choose_q_tile(seq_len, max_tile):
    if seq_len <= max_tile:
        return seq_len
    for t in (max_tile, 256, 128, 64, 32, 16, 8):
        if t <= max_tile and seq_len % t == 0:
            return t
    return seq_len


def _vmem_limit_bytes(S, E, H, D, tq, cap):
    Dp = D if D >= 128 else 128                         # lane padding of (H,S,D) scratch
    est = (
        2 * S * E * 4                                   # double-buffered x block (f32)
        + 2 * tq * E * 4                                # double-buffered out block
        + 4 * E * E * 2 * 2                             # wq + wkv + wo bf16 (worst case 2-buf)
        + S * E * 2                                     # xln cache (bf16)
        + 2 * H * S * Dp * 2                            # K + V caches (bf16)
        + S * 2 * E * 4                                 # packed KV f32 intermediate (q==0)
        + 2 * tq * S * 4 + 4 * tq * E * 4               # scores / q / attn headroom
    )
    return int(min(max(int(1.5 * est), 32 * 1024 * 1024), cap))


def prepare_params(params, embedding_dim, num_heads):
    """Hoisted out of the per-call path: slice the packed in-proj weight once,
    fold the 1/sqrt(D) softmax scale into Wq/bq, cast matmul weights to bf16."""
    E = embedding_dim
    D = E // num_heads
    scale = 1.0 / (float(D) ** 0.5)
    in_w = params["in_proj_weight"]
    in_b = params["in_proj_bias"]
    f32 = jnp.float32
    return {
        "gamma": params["ln_weight"].reshape(1, E).astype(f32),
        "beta": params["ln_bias"].reshape(1, E).astype(f32),
        "wq": (in_w[:E] * scale).astype(jnp.bfloat16),          # (E, E), pre-scaled
        "wkv": in_w[E:].astype(jnp.bfloat16),                   # (2E, E), packed K;V
        "wo": params["out_proj_weight"].astype(jnp.bfloat16),   # (E, E)
        "bq": (in_b[:E] * scale).reshape(1, E).astype(f32),
        "bkv": in_b[E:].reshape(1, 2 * E).astype(f32),
        "bo": params["out_proj_bias"].reshape(1, E).astype(f32),
    }


def multi_head_attention(x, prepared, num_heads):
    """x: (B, S, E) float32. prepared: output of prepare_params."""
    B, S, E = x.shape
    assert E % num_heads == 0
    D = E // num_heads
    max_tile, vmem_cap = _tpu_generation_hints()
    tq = _choose_q_tile(S, max_tile)
    nq = S // tq

    kernel = functools.partial(_mha_kernel, num_heads=num_heads, head_dim=D, q_tile=tq)

    def _const_spec(shape, buffered):
        idx_map = lambda b, q: tuple(0 for _ in shape)
        if buffered:
            # Grid-invariant operand: one resident copy instead of two.
            return pl.BlockSpec(shape, idx_map, pipeline_mode=pl.Buffered(1))
        return pl.BlockSpec(shape, idx_map)

    def build_and_call(single_buffer_consts):
        cs = functools.partial(_const_spec, buffered=single_buffer_consts)
        # TODO(synk): on v7x with very long S, pass x via memory_space=pl.ANY and
        # DMA it manually only on the q==0 step to drop the double-buffered f32
        # x block from the VMEM budget.
        return pl.pallas_call(
            kernel,
            out_shape=jax.ShapeDtypeStruct((B, S, E), x.dtype),
            grid_spec=pltpu.PrefetchScalarGridSpec(
                num_scalar_prefetch=0,
                grid=(B, nq),
                in_specs=[
                    pl.BlockSpec((1, S, E), lambda b, q: (b, 0, 0)),   # x (full sequence)
                    cs((1, E)), cs((1, E)),                            # gamma, beta
                    cs((E, E)), cs((2 * E, E)), cs((E, E)),            # Wq, Wkv, Wo (bf16)
                    cs((1, E)), cs((1, 2 * E)), cs((1, E)),            # bq, bkv, bo
                ],
                out_specs=pl.BlockSpec((1, tq, E), lambda b, q: (b, q, 0)),
                scratch_shapes=[
                    pltpu.VMEM((S, E), jnp.bfloat16),                  # cached LayerNorm(x)
                    pltpu.VMEM((num_heads, S, D), jnp.bfloat16),       # cached K (head-major)
                    pltpu.VMEM((num_heads, S, D), jnp.bfloat16),       # cached V (head-major)
                ],
            ),
            compiler_params=pltpu.CompilerParams(
                dimension_semantics=("parallel", "arbitrary"),
                vmem_limit_bytes=_vmem_limit_bytes(S, E, num_heads, D, tq, vmem_cap),
            ),
        )(x,
          prepared["gamma"], prepared["beta"],
          prepared["wq"], prepared["wkv"], prepared["wo"],
          prepared["bq"], prepared["bkv"], prepared["bo"])

    try:
        return build_and_call(True)
    except (TypeError, ValueError, NotImplementedError):
        # Narrow fallback: only for JAX versions that reject pl.Buffered(1) on
        # input BlockSpecs. Any genuine kernel error re-raises from this call.
        return build_and_call(False)


def reference(x, params, num_heads):
    """Pure-JAX f32 reference with eval-mode PyTorch semantics."""
    B, S, E = x.shape
    D = E // num_heads
    mean = jnp.mean(x, axis=-1, keepdims=True)
    xc = x - mean
    var = jnp.mean(xc * xc, axis=-1, keepdims=True)
    xln = xc * jax.lax.rsqrt(var + 1e-5) * params["ln_weight"] + params["ln_bias"]

    in_w = params["in_proj_weight"]
    in_b = params["in_proj_bias"]
    q = xln @ in_w[:E].T + in_b[:E]
    k = xln @ in_w[E:2 * E].T + in_b[E:2 * E]
    v = xln @ in_w[2 * E:].T + in_b[2 * E:]

    def split(t):  # (B,S,E) -> (B,H,S,D)
        return t.reshape(B, S, num_heads, D).transpose(0, 2, 1, 3)

    qh, kh, vh = split(q), split(k), split(v)
    s = jnp.einsum("bhqd,bhkd->bhqk", qh, kh) / jnp.sqrt(float(D))
    p = jax.nn.softmax(s, axis=-1)
    o = jnp.einsum("bhqk,bhkd->bhqd", p, vh)
    o = o.transpose(0, 2, 1, 3).reshape(B, S, E)
    return o @ params["out_proj_weight"].T + params["out_proj_bias"]


def init_params(key, embedding_dim):
    E = embedding_dim
    ks = jax.random.split(key, 6)
    scale = 1.0 / (E ** 0.5)
    return {
        "ln_weight": 1.0 + 0.1 * jax.random.normal(ks[3], (E,), jnp.float32),
        "ln_bias": 0.1 * jax.random.normal(ks[4], (E,), jnp.float32),
        "in_proj_weight": jax.random.uniform(ks[0], (3 * E, E), jnp.float32, -scale, scale),
        "in_proj_bias": jax.random.uniform(ks[1], (3 * E,), jnp.float32, -scale, scale),
        "out_proj_weight": jax.random.uniform(ks[2], (E, E), jnp.float32, -scale, scale),
        "out_proj_bias": jax.random.uniform(ks[5], (E,), jnp.float32, -scale, scale),
    }


if __name__ == "__main__":
    B, S, E, H = 2, 8, 32, 4          # batch, seq, embedding_dim, num_head (small demo)
    key = jax.random.PRNGKey(0)
    kx, kp = jax.random.split(key)
    x = jax.random.normal(kx, (B, S, E), jnp.float32)
    params = init_params(kp, E)

    # Hoisted weight prep (slice packed in-proj, fold 1/sqrt(D), cast to bf16) — once.
    prepared = prepare_params(params, E, H)

    out = multi_head_attention(x, prepared, num_heads=H)
    out = jax.block_until_ready(out)

    ref = reference(x, params, num_heads=H)
    assert out.shape == (B, S, E)
    # bf16 MXU operands + approx EUP reciprocal -> loosened tolerance vs f32 reference.
    assert jnp.allclose(out, ref, atol=3e-2, rtol=3e-2), "mismatch vs reference"
    print("KERNEL_OK")
</pallas_src>

<mosaic_0001>
module attributes {stable_mosaic.version = 11 : i64} {
  func.func @_mha_kernel(%arg0: i32, %arg1: i32, %arg2: memref<1x8x32xf32, #tpu.memory_space<vmem>>, %arg3: memref<1x32xf32, #tpu.memory_space<vmem>>, %arg4: memref<1x32xf32, #tpu.memory_space<vmem>>, %arg5: memref<32x32xbf16, #tpu.memory_space<vmem>>, %arg6: memref<64x32xbf16, #tpu.memory_space<vmem>>, %arg7: memref<32x32xbf16, #tpu.memory_space<vmem>>, %arg8: memref<1x32xf32, #tpu.memory_space<vmem>>, %arg9: memref<1x64xf32, #tpu.memory_space<vmem>>, %arg10: memref<1x32xf32, #tpu.memory_space<vmem>>, %arg11: memref<1x8x32xf32, #tpu.memory_space<vmem>>, %arg12: memref<8x32xbf16, #tpu.memory_space<vmem>>, %arg13: memref<4x8x8xbf16, #tpu.memory_space<vmem>>, %arg14: memref<4x8x8xbf16, #tpu.memory_space<vmem>>) attributes {dimension_semantics = [#tpu.dimension_semantics<parallel>, #tpu.dimension_semantics<arbitrary>], iteration_bounds = array<i64: 2, 1>, scalar_prefetch = 0 : i64, scratch_operands = 3 : i64, tpu.core_type = #tpu.core_type<tc>, window_params = [{transform_indices = @transform_0, window_bounds = array<i64: 1, 8, 32>}, {pipeline_mode = #tpu.pipeline_mode<synchronous>, transform_indices = @transform_1, window_bounds = array<i64: 1, 32>}, {pipeline_mode = #tpu.pipeline_mode<synchronous>, transform_indices = @transform_2, window_bounds = array<i64: 1, 32>}, {pipeline_mode = #tpu.pipeline_mode<synchronous>, transform_indices = @transform_3, window_bounds = array<i64: 32, 32>}, {pipeline_mode = #tpu.pipeline_mode<synchronous>, transform_indices = @transform_4, window_bounds = array<i64: 64, 32>}, {pipeline_mode = #tpu.pipeline_mode<synchronous>, transform_indices = @transform_5, window_bounds = array<i64: 32, 32>}, {pipeline_mode = #tpu.pipeline_mode<synchronous>, transform_indices = @transform_6, window_bounds = array<i64: 1, 32>}, {pipeline_mode = #tpu.pipeline_mode<synchronous>, transform_indices = @transform_7, window_bounds = array<i64: 1, 64>}, {pipeline_mode = #tpu.pipeline_mode<synchronous>, transform_indices = @transform_8, window_bounds = array<i64: 1, 32>}, {transform_indices = @transform_9, window_bounds = array<i64: 1, 8, 32>}]} {
    %c0_i32 = arith.constant 0 : i32
    %0 = arith.cmpi eq, %arg1, %c0_i32 : i32
    %1 = arith.extui %0 : i1 to i32
    %c0_i32_0 = arith.constant 0 : i32
    %2 = arith.cmpi ne, %1, %c0_i32_0 : i32
    scf.if %2 {
      %c0_50 = arith.constant 0 : index
      %c0_51 = arith.constant 0 : index
      %c0_52 = arith.constant 0 : index
      %101 = vector.load %arg2[%c0_50, %c0_51, %c0_52] : memref<1x8x32xf32, #tpu.memory_space<vmem>>, vector<1x8x32xf32>
      %102 = vector.shape_cast %101 : vector<1x8x32xf32> to vector<8x32xf32>
      %cst_53 = arith.constant dense<0.000000e+00> : vector<8xf32>
      %103 = vector.multi_reduction <add>, %102, %cst_53 [1] : vector<8x32xf32> to vector<8xf32>
      %104 = vector.shape_cast %103 : vector<8xf32> to vector<8x1xf32>
      %cst_54 = arith.constant 3.200000e+01 : f32
      %105 = vector.broadcast %cst_54 : f32 to vector<8x1xf32>
      %106 = arith.divf %104, %105 : vector<8x1xf32>
      %107 = vector.broadcast %106 : vector<8x1xf32> to vector<8x32xf32>
      %108 = arith.subf %102, %107 : vector<8x32xf32>
      %109 = arith.mulf %108, %108 : vector<8x32xf32>
      %cst_55 = arith.constant dense<0.000000e+00> : vector<8xf32>
      %110 = vector.multi_reduction <add>, %109, %cst_55 [1] : vector<8x32xf32> to vector<8xf32>
      %111 = vector.shape_cast %110 : vector<8xf32> to vector<8x1xf32>
      %cst_56 = arith.constant 3.200000e+01 : f32
      %112 = vector.broadcast %cst_56 : f32 to vector<8x1xf32>
      %113 = arith.divf %111, %112 : vector<8x1xf32>
      %cst_57 = arith.constant 9.99999974E-6 : f32
      %114 = vector.broadcast %cst_57 : f32 to vector<8x1xf32>
      %115 = arith.addf %113, %114 : vector<8x1xf32>
      %116 = math.rsqrt %115 : vector<8x1xf32>
      %117 = vector.broadcast %116 : vector<8x1xf32> to vector<8x32xf32>
      %118 = arith.mulf %108, %117 : vector<8x32xf32>
      %c0_58 = arith.constant 0 : index
      %c0_59 = arith.constant 0 : index
      %119 = vector.load %arg3[%c0_58, %c0_59] : memref<1x32xf32, #tpu.memory_space<vmem>>, vector<1x32xf32>
      %120 = vector.broadcast %119 : vector<1x32xf32> to vector<8x32xf32>
      %121 = arith.mulf %118, %120 : vector<8x32xf32>
      %c0_60 = arith.constant 0 : index
      %c0_61 = arith.constant 0 : index
      %122 = vector.load %arg4[%c0_60, %c0_61] : memref<1x32xf32, #tpu.memory_space<vmem>>, vector<1x32xf32>
      %123 = vector.broadcast %122 : vector<1x32xf32> to vector<8x32xf32>
      %124 = arith.addf %121, %123 : vector<8x32xf32>
      %125 = arith.truncf %124 : vector<8x32xf32> to vector<8x32xbf16>
      %c0_62 = arith.constant 0 : index
      %c0_63 = arith.constant 0 : index
      %126 = vector.load %arg12[%c0_62, %c0_63] : memref<8x32xbf16, #tpu.memory_space<vmem>>, vector<8x32xbf16>
      tpu.vector_store %arg12[%c0_62, %c0_63], %125 {strides = array<i32>} : memref<8x32xbf16, #tpu.memory_space<vmem>>, vector<8x32xbf16>,
      %c0_64 = arith.constant 0 : index
      %c0_65 = arith.constant 0 : index
      %127 = vector.load %arg6[%c0_64, %c0_65] : memref<64x32xbf16, #tpu.memory_space<vmem>>, vector<64x32xbf16>
      %cst_66 = arith.constant dense<0.000000e+00> : vector<8x64xf32>
      %128 = tpu.matmul %125, %127, %cst_66 {dimension_numbers = #tpu.dot_dimension_numbers<[1], [1], [0], [0], [0, 0, 1, 0], [], []>} : vector<8x32xbf16>, vector<64x32xbf16>, vector<8x64xf32> -> vector<8x64xf32>
      %c0_67 = arith.constant 0 : index
      %c0_68 = arith.constant 0 : index
      %129 = vector.load %arg9[%c0_67, %c0_68] : memref<1x64xf32, #tpu.memory_space<vmem>>, vector<1x64xf32>
      %130 = vector.broadcast %129 : vector<1x64xf32> to vector<8x64xf32>
      %131 = arith.addf %128, %130 : vector<8x64xf32>
      %132 = arith.truncf %131 : vector<8x64xf32> to vector<8x64xbf16>
      %133 = vector.extract_strided_slice %132 {offsets = [0, 0], sizes = [8, 8], strides = [1, 1]} : vector<8x64xbf16> to vector<8x8xbf16>
      %c0_69 = arith.constant 0 : index
      %c0_70 = arith.constant 0 : index
      %c0_71 = arith.constant 0 : index
      %134 = vector.load %arg13[%c0_69, %c0_70, %c0_71] : memref<4x8x8xbf16, #tpu.memory_space<vmem>>, vector<1x8x8xbf16>
      %135 = vector.shape_cast %134 : vector<1x8x8xbf16> to vector<8x8xbf16>
      %136 = vector.shape_cast %133 : vector<8x8xbf16> to vector<1x8x8xbf16>
      tpu.vector_store %arg13[%c0_69, %c0_70, %c0_71], %136 {strides = array<i32>} : memref<4x8x8xbf16, #tpu.memory_space<vmem>>, vector<1x8x8xbf16>,
      %137 = vector.extract_strided_slice %132 {offsets = [0, 32], sizes = [8, 8], strides = [1, 1]} : vector<8x64xbf16> to vector<8x8xbf16>
      %c0_72 = arith.constant 0 : index
      %c0_73 = arith.constant 0 : index
      %c0_74 = arith.constant 0 : index
      %138 = vector.load %arg14[%c0_72, %c0_73, %c0_74] : memref<4x8x8xbf16, #tpu.memory_space<vmem>>, vector<1x8x8xbf16>
      %139 = vector.shape_cast %138 : vector<1x8x8xbf16> to vector<8x8xbf16>
      %140 = vector.shape_cast %137 : vector<8x8xbf16> to vector<1x8x8xbf16>
      tpu.vector_store %arg14[%c0_72, %c0_73, %c0_74], %140 {strides = array<i32>} : memref<4x8x8xbf16, #tpu.memory_space<vmem>>, vector<1x8x8xbf16>,
      %141 = vector.extract_strided_slice %132 {offsets = [0, 8], sizes = [8, 8], strides = [1, 1]} : vector<8x64xbf16> to vector<8x8xbf16>
      %c1_75 = arith.constant 1 : index
      %c0_76 = arith.constant 0 : index
      %c0_77 = arith.constant 0 : index
      %142 = vector.load %arg13[%c1_75, %c0_76, %c0_77] : memref<4x8x8xbf16, #tpu.memory_space<vmem>>, vector<1x8x8xbf16>
      %143 = vector.shape_cast %142 : vector<1x8x8xbf16> to vector<8x8xbf16>
      %144 = vector.shape_cast %141 : vector<8x8xbf16> to vector<1x8x8xbf16>
      tpu.vector_store %arg13[%c1_75, %c0_76, %c0_77], %144 {strides = array<i32>} : memref<4x8x8xbf16, #tpu.memory_space<vmem>>, vector<1x8x8xbf16>,
      %145 = vector.extract_strided_slice %132 {offsets = [0, 40], sizes = [8, 8], strides = [1, 1]} : vector<8x64xbf16> to vector<8x8xbf16>
      %c1_78 = arith.constant 1 : index
      %c0_79 = arith.constant 0 : index
      %c0_80 = arith.constant 0 : index
      %146 = vector.load %arg14[%c1_78, %c0_79, %c0_80] : memref<4x8x8xbf16, #tpu.memory_space<vmem>>, vector<1x8x8xbf16>
      %147 = vector.shape_cast %146 : vector<1x8x8xbf16> to vector<8x8xbf16>
      %148 = vector.shape_cast %145 : vector<8x8xbf16> to vector<1x8x8xbf16>
      tpu.vector_store %arg14[%c1_78, %c0_79, %c0_80], %148 {strides = array<i32>} : memref<4x8x8xbf16, #tpu.memory_space<vmem>>, vector<1x8x8xbf16>,
      %149 = vector.extract_strided_slice %132 {offsets = [0, 16], sizes = [8, 8], strides = [1, 1]} : vector<8x64xbf16> to vector<8x8xbf16>
      %c2_81 = arith.constant 2 : index
      %c0_82 = arith.constant 0 : index
      %c0_83 = arith.constant 0 : index
      %150 = vector.load %arg13[%c2_81, %c0_82, %c0_83] : memref<4x8x8xbf16, #tpu.memory_space<vmem>>, vector<1x8x8xbf16>
      %151 = vector.shape_cast %150 : vector<1x8x8xbf16> to vector<8x8xbf16>
      %152 = vector.shape_cast %149 : vector<8x8xbf16> to vector<1x8x8xbf16>
      tpu.vector_store %arg13[%c2_81, %c0_82, %c0_83], %152 {strides = array<i32>} : memref<4x8x8xbf16, #tpu.memory_space<vmem>>, vector<1x8x8xbf16>,
      %153 = vector.extract_strided_slice %132 {offsets = [0, 48], sizes = [8, 8], strides = [1, 1]} : vector<8x64xbf16> to vector<8x8xbf16>
      %c2_84 = arith.constant 2 : index
      %c0_85 = arith.constant 0 : index
      %c0_86 = arith.constant 0 : index
      %154 = vector.load %arg14[%c2_84, %c0_85, %c0_86] : memref<4x8x8xbf16, #tpu.memory_space<vmem>>, vector<1x8x8xbf16>
      %155 = vector.shape_cast %154 : vector<1x8x8xbf16> to vector<8x8xbf16>
      %156 = vector.shape_cast %153 : vector<8x8xbf16> to vector<1x8x8xbf16>
      tpu.vector_store %arg14[%c2_84, %c0_85, %c0_86], %156 {strides = array<i32>} : memref<4x8x8xbf16, #tpu.memory_space<vmem>>, vector<1x8x8xbf16>,
      %157 = vector.extract_strided_slice %132 {offsets = [0, 24], sizes = [8, 8], strides = [1, 1]} : vector<8x64xbf16> to vector<8x8xbf16>
      %c3_87 = arith.constant 3 : index
      %c0_88 = arith.constant 0 : index
      %c0_89 = arith.constant 0 : index
      %158 = vector.load %arg13[%c3_87, %c0_88, %c0_89] : memref<4x8x8xbf16, #tpu.memory_space<vmem>>, vector<1x8x8xbf16>
      %159 = vector.shape_cast %158 : vector<1x8x8xbf16> to vector<8x8xbf16>
      %160 = vector.shape_cast %157 : vector<8x8xbf16> to vector<1x8x8xbf16>
      tpu.vector_store %arg13[%c3_87, %c0_88, %c0_89], %160 {strides = array<i32>} : memref<4x8x8xbf16, #tpu.memory_space<vmem>>, vector<1x8x8xbf16>,
      %161 = vector.extract_strided_slice %132 {offsets = [0, 56], sizes = [8, 8], strides = [1, 1]} : vector<8x64xbf16> to vector<8x8xbf16>
      %c3_90 = arith.constant 3 : index
      %c0_91 = arith.constant 0 : index
      %c0_92 = arith.constant 0 : index
      %162 = vector.load %arg14[%c3_90, %c0_91, %c0_92] : memref<4x8x8xbf16, #tpu.memory_space<vmem>>, vector<1x8x8xbf16>
      %163 = vector.shape_cast %162 : vector<1x8x8xbf16> to vector<8x8xbf16>
      %164 = vector.shape_cast %161 : vector<8x8xbf16> to vector<1x8x8xbf16>
      tpu.vector_store %arg14[%c3_90, %c0_91, %c0_92], %164 {strides = array<i32>} : memref<4x8x8xbf16, #tpu.memory_space<vmem>>, vector<1x8x8xbf16>,
    } else {
    }
    %c8_i32 = arith.constant 8 : i32
    %3 = arith.muli %arg1, %c8_i32 : i32
    %4 = tpu.assume_multiple %3, 8 : i32
    %5 = arith.index_cast %4 : i32 to index
    %c0 = arith.constant 0 : index
    %6 = vector.load %arg12[%5, %c0] : memref<8x32xbf16, #tpu.memory_space<vmem>>, vector<8x32xbf16>
    %c0_1 = arith.constant 0 : index
    %c0_2 = arith.constant 0 : index
    %7 = vector.load %arg5[%c0_1, %c0_2] : memref<32x32xbf16, #tpu.memory_space<vmem>>, vector<32x32xbf16>
    %cst = arith.constant dense<0.000000e+00> : vector<8x32xf32>
    %8 = tpu.matmul %6, %7, %cst {dimension_numbers = #tpu.dot_dimension_numbers<[1], [1], [0], [0], [0, 0, 1, 0], [], []>} : vector<8x32xbf16>, vector<32x32xbf16>, vector<8x32xf32> -> vector<8x32xf32>
    %c0_3 = arith.constant 0 : index
    %c0_4 = arith.constant 0 : index
    %9 = vector.load %arg8[%c0_3, %c0_4] : memref<1x32xf32, #tpu.memory_space<vmem>>, vector<1x32xf32>
    %10 = vector.broadcast %9 : vector<1x32xf32> to vector<8x32xf32>
    %11 = arith.addf %8, %10 : vector<8x32xf32>
    %12 = vector.extract_strided_slice %11 {offsets = [0, 0], sizes = [8, 8], strides = [1, 1]} : vector<8x32xf32> to vector<8x8xf32>
    %13 = arith.truncf %12 : vector<8x8xf32> to vector<8x8xbf16>
    %c0_5 = arith.constant 0 : index
    %c0_6 = arith.constant 0 : index
    %c0_7 = arith.constant 0 : index
    %14 = vector.load %arg13[%c0_5, %c0_6, %c0_7] : memref<4x8x8xbf16, #tpu.memory_space<vmem>>, vector<1x8x8xbf16>
    %15 = vector.shape_cast %14 : vector<1x8x8xbf16> to vector<8x8xbf16>
    %c0_8 = arith.constant 0 : index
    %c0_9 = arith.constant 0 : index
    %c0_10 = arith.constant 0 : index
    %16 = vector.load %arg14[%c0_8, %c0_9, %c0_10] : memref<4x8x8xbf16, #tpu.memory_space<vmem>>, vector<1x8x8xbf16>
    %17 = vector.shape_cast %16 : vector<1x8x8xbf16> to vector<8x8xbf16>
    %cst_11 = arith.constant dense<0.000000e+00> : vector<8x8xf32>
    %18 = tpu.matmul %13, %15, %cst_11 {dimension_numbers = #tpu.dot_dimension_numbers<[1], [1], [0], [0], [0, 0, 1, 0], [], []>} : vector<8x8xbf16>, vector<8x8xbf16>, vector<8x8xf32> -> vector<8x8xf32>
    %cst_12 = arith.constant dense<0xFF800000> : vector<8xf32>
    %19 = vector.multi_reduction <maximumf>, %18, %cst_12 [1] : vector<8x8xf32> to vector<8xf32>
    %20 = vector.shape_cast %19 : vector<8xf32> to vector<8x1xf32>
    %21 = vector.broadcast %20 : vector<8x1xf32> to vector<8x8xf32>
    %22 = arith.subf %18, %21 : vector<8x8xf32>
    %23 = math.exp %22 : vector<8x8xf32>
    %cst_13 = arith.constant dense<0.000000e+00> : vector<8xf32>
    %24 = vector.multi_reduction <add>, %23, %cst_13 [1] : vector<8x8xf32> to vector<8xf32>
    %25 = vector.shape_cast %24 : vector<8xf32> to vector<8x1xf32>
    %26 = tpu.reciprocal %25 {approx = true} : vector<8x1xf32> -> vector<8x1xf32>
    %27 = arith.truncf %23 : vector<8x8xf32> to vector<8x8xbf16>
    %cst_14 = arith.constant dense<0.000000e+00> : vector<8x8xf32>
    %28 = tpu.matmul %27, %17, %cst_14 {dimension_numbers = #tpu.dot_dimension_numbers<[1], [0], [0], [1], [0, 0, 1, 1], [], []>} : vector<8x8xbf16>, vector<8x8xbf16>, vector<8x8xf32> -> vector<8x8xf32>
    %29 = vector.broadcast %26 : vector<8x1xf32> to vector<8x8xf32>
    %30 = arith.mulf %28, %29 : vector<8x8xf32>
    %31 = arith.truncf %30 : vector<8x8xf32> to vector<8x8xbf16>
    %32 = vector.extract_strided_slice %11 {offsets = [0, 8], sizes = [8, 8], strides = [1, 1]} : vector<8x32xf32> to vector<8x8xf32>
    %33 = arith.truncf %32 : vector<8x8xf32> to vector<8x8xbf16>
    %c1 = arith.constant 1 : index
    %c0_15 = arith.constant 0 : index
    %c0_16 = arith.constant 0 : index
    %34 = vector.load %arg13[%c1, %c0_15, %c0_16] : memref<4x8x8xbf16, #tpu.memory_space<vmem>>, vector<1x8x8xbf16>
    %35 = vector.shape_cast %34 : vector<1x8x8xbf16> to vector<8x8xbf16>
    %c1_17 = arith.constant 1 : index
    %c0_18 = arith.constant 0 : index
    %c0_19 = arith.constant 0 : index
    %36 = vector.load %arg14[%c1_17, %c0_18, %c0_19] : memref<4x8x8xbf16, #tpu.memory_space<vmem>>, vector<1x8x8xbf16>
    %37 = vector.shape_cast %36 : vector<1x8x8xbf16> to vector<8x8xbf16>
    %cst_20 = arith.constant dense<0.000000e+00> : vector<8x8xf32>
    %38 = tpu.matmul %33, %35, %cst_20 {dimension_numbers = #tpu.dot_dimension_numbers<[1], [1], [0], [0], [0, 0, 1, 0], [], []>} : vector<8x8xbf16>, vector<8x8xbf16>, vector<8x8xf32> -> vector<8x8xf32>
    %cst_21 = arith.constant dense<0xFF800000> : vector<8xf32>
    %39 = vector.multi_reduction <maximumf>, %38, %cst_21 [1] : vector<8x8xf32> to vector<8xf32>
    %40 = vector.shape_cast %39 : vector<8xf32> to vector<8x1xf32>
    %41 = vector.broadcast %40 : vector<8x1xf32> to vector<8x8xf32>
    %42 = arith.subf %38, %41 : vector<8x8xf32>
    %43 = math.exp %42 : vector<8x8xf32>
    %cst_22 = arith.constant dense<0.000000e+00> : vector<8xf32>
    %44 = vector.multi_reduction <add>, %43, %cst_22 [1] : vector<8x8xf32> to vector<8xf32>
    %45 = vector.shape_cast %44 : vector<8xf32> to vector<8x1xf32>
    %46 = tpu.reciprocal %45 {approx = true} : vector<8x1xf32> -> vector<8x1xf32>
    %47 = arith.truncf %43 : vector<8x8xf32> to vector<8x8xbf16>
    %cst_23 = arith.constant dense<0.000000e+00> : vector<8x8xf32>
    %48 = tpu.matmul %47, %37, %cst_23 {dimension_numbers = #tpu.dot_dimension_numbers<[1], [0], [0], [1], [0, 0, 1, 1], [], []>} : vector<8x8xbf16>, vector<8x8xbf16>, vector<8x8xf32> -> vector<8x8xf32>
    %49 = vector.broadcast %46 : vector<8x1xf32> to vector<8x8xf32>
    %50 = arith.mulf %48, %49 : vector<8x8xf32>
    %51 = arith.truncf %50 : vector<8x8xf32> to vector<8x8xbf16>
    %52 = vector.extract_strided_slice %11 {offsets = [0, 16], sizes = [8, 8], strides = [1, 1]} : vector<8x32xf32> to vector<8x8xf32>
    %53 = arith.truncf %52 : vector<8x8xf32> to vector<8x8xbf16>
    %c2 = arith.constant 2 : index
    %c0_24 = arith.constant 0 : index
    %c0_25 = arith.constant 0 : index
    %54 = vector.load %arg13[%c2, %c0_24, %c0_25] : memref<4x8x8xbf16, #tpu.memory_space<vmem>>, vector<1x8x8xbf16>
    %55 = vector.shape_cast %54 : vector<1x8x8xbf16> to vector<8x8xbf16>
    %c2_26 = arith.constant 2 : index
    %c0_27 = arith.constant 0 : index
    %c0_28 = arith.constant 0 : index
    %56 = vector.load %arg14[%c2_26, %c0_27, %c0_28] : memref<4x8x8xbf16, #tpu.memory_space<vmem>>, vector<1x8x8xbf16>
    %57 = vector.shape_cast %56 : vector<1x8x8xbf16> to vector<8x8xbf16>
    %cst_29 = arith.constant dense<0.000000e+00> : vector<8x8xf32>
    %58 = tpu.matmul %53, %55, %cst_29 {dimension_numbers = #tpu.dot_dimension_numbers<[1], [1], [0], [0], [0, 0, 1, 0], [], []>} : vector<8x8xbf16>, vector<8x8xbf16>, vector<8x8xf32> -> vector<8x8xf32>
    %cst_30 = arith.constant dense<0xFF800000> : vector<8xf32>
    %59 = vector.multi_reduction <maximumf>, %58, %cst_30 [1] : vector<8x8xf32> to vector<8xf32>
    %60 = vector.shape_cast %59 : vector<8xf32> to vector<8x1xf32>
    %61 = vector.broadcast %60 : vector<8x1xf32> to vector<8x8xf32>
    %62 = arith.subf %58, %61 : vector<8x8xf32>
    %63 = math.exp %62 : vector<8x8xf32>
    %cst_31 = arith.constant dense<0.000000e+00> : vector<8xf32>
    %64 = vector.multi_reduction <add>, %63, %cst_31 [1] : vector<8x8xf32> to vector<8xf32>
    %65 = vector.shape_cast %64 : vector<8xf32> to vector<8x1xf32>
    %66 = tpu.reciprocal %65 {approx = true} : vector<8x1xf32> -> vector<8x1xf32>
    %67 = arith.truncf %63 : vector<8x8xf32> to vector<8x8xbf16>
    %cst_32 = arith.constant dense<0.000000e+00> : vector<8x8xf32>
    %68 = tpu.matmul %67, %57, %cst_32 {dimension_numbers = #tpu.dot_dimension_numbers<[1], [0], [0], [1], [0, 0, 1, 1], [], []>} : vector<8x8xbf16>, vector<8x8xbf16>, vector<8x8xf32> -> vector<8x8xf32>
    %69 = vector.broadcast %66 : vector<8x1xf32> to vector<8x8xf32>
    %70 = arith.mulf %68, %69 : vector<8x8xf32>
    %71 = arith.truncf %70 : vector<8x8xf32> to vector<8x8xbf16>
    %72 = vector.extract_strided_slice %11 {offsets = [0, 24], sizes = [8, 8], strides = [1, 1]} : vector<8x32xf32> to vector<8x8xf32>
    %73 = arith.truncf %72 : vector<8x8xf32> to vector<8x8xbf16>
    %c3 = arith.constant 3 : index
    %c0_33 = arith.constant 0 : index
    %c0_34 = arith.constant 0 : index
    %74 = vector.load %arg13[%c3, %c0_33, %c0_34] : memref<4x8x8xbf16, #tpu.memory_space<vmem>>, vector<1x8x8xbf16>
    %75 = vector.shape_cast %74 : vector<1x8x8xbf16> to vector<8x8xbf16>
    %c3_35 = arith.constant 3 : index
    %c0_36 = arith.constant 0 : index
    %c0_37 = arith.constant 0 : index
    %76 = vector.load %arg14[%c3_35, %c0_36, %c0_37] : memref<4x8x8xbf16, #tpu.memory_space<vmem>>, vector<1x8x8xbf16>
    %77 = vector.shape_cast %76 : vector<1x8x8xbf16> to vector<8x8xbf16>
    %cst_38 = arith.constant dense<0.000000e+00> : vector<8x8xf32>
    %78 = tpu.matmul %73, %75, %cst_38 {dimension_numbers = #tpu.dot_dimension_numbers<[1], [1], [0], [0], [0, 0, 1, 0], [], []>} : vector<8x8xbf16>, vector<8x8xbf16>, vector<8x8xf32> -> vector<8x8xf32>
    %cst_39 = arith.constant dense<0xFF800000> : vector<8xf32>
    %79 = vector.multi_reduction <maximumf>, %78, %cst_39 [1] : vector<8x8xf32> to vector<8xf32>
    %80 = vector.shape_cast %79 : vector<8xf32> to vector<8x1xf32>
    %81 = vector.broadcast %80 : vector<8x1xf32> to vector<8x8xf32>
    %82 = arith.subf %78, %81 : vector<8x8xf32>
    %83 = math.exp %82 : vector<8x8xf32>
    %cst_40 = arith.constant dense<0.000000e+00> : vector<8xf32>
    %84 = vector.multi_reduction <add>, %83, %cst_40 [1] : vector<8x8xf32> to vector<8xf32>
    %85 = vector.shape_cast %84 : vector<8xf32> to vector<8x1xf32>
    %86 = tpu.reciprocal %85 {approx = true} : vector<8x1xf32> -> vector<8x1xf32>
    %87 = arith.truncf %83 : vector<8x8xf32> to vector<8x8xbf16>
    %cst_41 = arith.constant dense<0.000000e+00> : vector<8x8xf32>
    %88 = tpu.matmul %87, %77, %cst_41 {dimension_numbers = #tpu.dot_dimension_numbers<[1], [0], [0], [1], [0, 0, 1, 1], [], []>} : vector<8x8xbf16>, vector<8x8xbf16>, vector<8x8xf32> -> vector<8x8xf32>
    %89 = vector.broadcast %86 : vector<8x1xf32> to vector<8x8xf32>
    %90 = arith.mulf %88, %89 : vector<8x8xf32>
    %91 = arith.truncf %90 : vector<8x8xf32> to vector<8x8xbf16>
    %92 = tpu.concatenate %31, %51, %71, %91 in 1 : vector<8x8xbf16>, vector<8x8xbf16>, vector<8x8xbf16>, vector<8x8xbf16> -> vector<8x32xbf16>
    %c0_42 = arith.constant 0 : index
    %c0_43 = arith.constant 0 : index
    %93 = vector.load %arg7[%c0_42, %c0_43] : memref<32x32xbf16, #tpu.memory_space<vmem>>, vector<32x32xbf16>
    %cst_44 = arith.constant dense<0.000000e+00> : vector<8x32xf32>
    %94 = tpu.matmul %92, %93, %cst_44 {dimension_numbers = #tpu.dot_dimension_numbers<[1], [1], [0], [0], [0, 0, 1, 0], [], []>} : vector<8x32xbf16>, vector<32x32xbf16>, vector<8x32xf32> -> vector<8x32xf32>
    %c0_45 = arith.constant 0 : index
    %c0_46 = arith.constant 0 : index
    %95 = vector.load %arg10[%c0_45, %c0_46] : memref<1x32xf32, #tpu.memory_space<vmem>>, vector<1x32xf32>
    %96 = vector.broadcast %95 : vector<1x32xf32> to vector<8x32xf32>
    %97 = arith.addf %94, %96 : vector<8x32xf32>
    %c0_47 = arith.constant 0 : index
    %c0_48 = arith.constant 0 : index
    %c0_49 = arith.constant 0 : index
    %98 = vector.load %arg11[%c0_47, %c0_48, %c0_49] : memref<1x8x32xf32, #tpu.memory_space<vmem>>, vector<1x8x32xf32>
    %99 = vector.shape_cast %98 : vector<1x8x32xf32> to vector<8x32xf32>
    %100 = vector.shape_cast %97 : vector<8x32xf32> to vector<1x8x32xf32>
    tpu.vector_store %arg11[%c0_47, %c0_48, %c0_49], %100 {strides = array<i32>} : memref<1x8x32xf32, #tpu.memory_space<vmem>>, vector<1x8x32xf32>,
    return
  }
  func.func @transform_0(%arg0: i32, %arg1: i32) -> (i32, i32, i32) {
    %c0_i32 = arith.constant 0 : i32
    %c0_i32_0 = arith.constant 0 : i32
    %c0_i32_1 = arith.constant 0 : i32
    return %arg0, %c0_i32, %c0_i32_0 : i32, i32, i32
  }
  func.func @transform_1(%arg0: i32, %arg1: i32) -> (i32, i32) {
    %c0_i32 = arith.constant 0 : i32
    %c0_i32_0 = arith.constant 0 : i32
    %c0_i32_1 = arith.constant 0 : i32
    return %c0_i32, %c0_i32_0 : i32, i32
  }
  func.func @transform_2(%arg0: i32, %arg1: i32) -> (i32, i32) {
    %c0_i32 = arith.constant 0 : i32
    %c0_i32_0 = arith.constant 0 : i32
    %c0_i32_1 = arith.constant 0 : i32
    return %c0_i32, %c0_i32_0 : i32, i32
  }
  func.func @transform_3(%arg0: i32, %arg1: i32) -> (i32, i32) {
    %c0_i32 = arith.constant 0 : i32
    %c0_i32_0 = arith.constant 0 : i32
    %c0_i32_1 = arith.constant 0 : i32
    return %c0_i32, %c0_i32_0 : i32, i32
  }
  func.func @transform_4(%arg0: i32, %arg1: i32) -> (i32, i32) {
    %c0_i32 = arith.constant 0 : i32
    %c0_i32_0 = arith.constant 0 : i32
    %c0_i32_1 = arith.constant 0 : i32
    return %c0_i32, %c0_i32_0 : i32, i32
  }
  func.func @transform_5(%arg0: i32, %arg1: i32) -> (i32, i32) {
    %c0_i32 = arith.constant 0 : i32
    %c0_i32_0 = arith.constant 0 : i32
    %c0_i32_1 = arith.constant 0 : i32
    return %c0_i32, %c0_i32_0 : i32, i32
  }
  func.func @transform_6(%arg0: i32, %arg1: i32) -> (i32, i32) {
    %c0_i32 = arith.constant 0 : i32
    %c0_i32_0 = arith.constant 0 : i32
    %c0_i32_1 = arith.constant 0 : i32
    return %c0_i32, %c0_i32_0 : i32, i32
  }
  func.func @transform_7(%arg0: i32, %arg1: i32) -> (i32, i32) {
    %c0_i32 = arith.constant 0 : i32
    %c0_i32_0 = arith.constant 0 : i32
    %c0_i32_1 = arith.constant 0 : i32
    return %c0_i32, %c0_i32_0 : i32, i32
  }
  func.func @transform_8(%arg0: i32, %arg1: i32) -> (i32, i32) {
    %c0_i32 = arith.constant 0 : i32
    %c0_i32_0 = arith.constant 0 : i32
    %c0_i32_1 = arith.constant 0 : i32
    return %c0_i32, %c0_i32_0 : i32, i32
  }
  func.func @transform_9(%arg0: i32, %arg1: i32) -> (i32, i32, i32) {
    %c0_i32 = arith.constant 0 : i32
    %c0_i32_0 = arith.constant 0 : i32
    return %arg0, %arg1, %c0_i32 : i32, i32, i32
  }
}

</mosaic_0001>

<llo_original>
// kernel: tpu_custom_call.1
$region0: #{tpu_custom_call.1}
  #allocation0 [shape = 'u32[]', space=smem, size = 0x4, offset = 0x4, fixed_abs, tag = 'smem constant byte address 0x4 - core index']
  #allocation1 [shape = 'u32[144,128]{1,0:T(1,128)}', space=vmem, size = 0x12000, scoped, tag = 'internal scratch']
  #allocation2 [shape = 'bf16[8,32]{1,0:T(8,128)(2,1)}', space=vmem, size = 0x800, scoped, tag = 'scratch operand']
  #allocation3 [shape = 'bf16[4,8,8]{2,1,0:T(8,128)(2,1)}', space=vmem, size = 0x2000, scoped, tag = 'scratch operand']
  #allocation4 [shape = 'bf16[4,8,8]{2,1,0:T(8,128)(2,1)}', space=vmem, size = 0x2000, scoped, tag = 'scratch operand']
  %s0 = inlined_call_operand.vmem [shape: f32[2,8,32], index: 0, kind: input, shape index: {}]
  %s1 = inlined_call_operand.vmem [shape: f32[1,32], index: 1, kind: input, shape index: {}]
  %s2 = inlined_call_operand.vmem [shape: f32[1,32], index: 2, kind: input, shape index: {}]
  %s3 = inlined_call_operand.vmem [shape: bf16[32,32], index: 3, kind: input, shape index: {}]
  %s4 = inlined_call_operand.vmem [shape: bf16[64,32], index: 4, kind: input, shape index: {}]
  %s5 = inlined_call_operand.vmem [shape: bf16[32,32], index: 5, kind: input, shape index: {}]
  %s6 = inlined_call_operand.vmem [shape: f32[1,32], index: 6, kind: input, shape index: {}]
  %s7 = inlined_call_operand.vmem [shape: f32[1,64], index: 7, kind: input, shape index: {}]
  %s8 = inlined_call_operand.vmem [shape: f32[1,32], index: 8, kind: input, shape index: {}]
  %s9 = inlined_call_operand.hbm [shape: f32[2,8,32], index: 9, kind: output, shape index: {}]
  %s10 = sld [smem:[#allocation0]]
  $region73: #{tpu_custom_call.1} parent=0
    _
  %s12 = ssub.s32 1, %s10
  %s13 = scalar_select 0, %s12, %s10
  $region1: #{tpu_custom_call.1} parent=0
    #allocation5 [shape = 'u8[8192]{0}', space=vmem, size = 0x2000, scoped, tag = 'output window, operand 0']
    #allocation6 [shape = 's32[2]{0}', space=sflag, size = 0x8, scoped, tag = 'scoped memory for tpu_custom_call.1']
    %14 = vsyncpa [#allocation6], 0
    %s15 = scalar_lea.sflag [#allocation6], 1
    %16 = vsyncpa %s15, 0
    loop: start=0, step=1, limit=4
    $region2: #{tpu_custom_call.1} parent=1 // loop_pre_header
      _
    $region3: #{tpu_custom_call.1} parent=1 // loop_header
      %s18 = sphi 0, %s22
      %p19 = scmp.ge.s32.totalorder %s18, 4
      %s25 = sphi 0, %s37
      %s26 = sphi 0, %s33
      %s27 = sphi 0, %s25
      %s28 = sphi 0, %s26
      %s29 = sphi 0, %s27
      %s30 = sphi 0, %s28
      %s40 = sphi 0, %s42
      %s43 = sphi 0, %s40
      %s44 = sphi 0, %s43
      %s60 = sphi 0, %s44
      %s64 = sphi 0, %s64
      %s66 = sphi 0, %s64
      %s67 = sphi 0, %s66
      %s81 = sphi 0, %s67
      %s85 = sphi 0, %s85
      %s87 = sphi 0, %s85
      %s88 = sphi 0, %s87
      %s102 = sphi 0, %s88
      %s106 = sphi 0, %s106
      %s108 = sphi 0, %s106
      %s109 = sphi 0, %s108
      %s123 = sphi 0, %s109
      %s127 = sphi 0, %s127
      %s129 = sphi 0, %s127
      %s130 = sphi 0, %s129
      %s144 = sphi 0, %s130
      %s148 = sphi 0, %s148
      %s150 = sphi 0, %s148
      %s151 = sphi 0, %s150
      %s165 = sphi 0, %s151
      %s169 = sphi 0, %s169
      %s171 = sphi 0, %s169
      %s172 = sphi 0, %s171
      %s186 = sphi 0, %s172
      %s190 = sphi 0, %s190
      %s192 = sphi 0, %s190
      %s193 = sphi 0, %s192
      %s207 = sphi 0, %s193
      %s211 = sphi 0, %s211
      %s213 = sphi 0, %s211
      %s214 = sphi 0, %s213
      %s228 = sphi 0, %s214
      %s236 = sphi 0, %s238
      %s239 = sphi 0, %s236
      %s240 = sphi 0, %s239
      %s256 = sphi 0, %s240
    $region4: #{tpu_custom_call.1} parent=1 // loop_header_branch
      %21 = sbr.rel (%p19) target = $region8
    $region5: #{tpu_custom_call.1} parent=1 // loop_body
      %s23 = ssub.s32 %s18, 1
      %s24 = ssub.s32 %s18, 2
      %s31 = sadd.s32 1, %s26
      %p32 = scmp.ge.s32.totalorder %s31, 1
      %s33 = scalar_select %p32, 0, %s31
      %s34 = sadd.s32 1, %s25
      %s35 = scalar_select %p32, %s34, %s25
      %p36 = scmp.ge.s32.totalorder %s35, 2
      %s37 = scalar_select %p36, 0, %s35
      %s38 = ssub.s32 %s25, %s37
      %p39 = scmp.eq.s32.totalorder %s38, 0
      %s41 = sadd.s32 %s40, 1
      %s42 = scalar_select %p39, %s40, %s41
      %p45 = pneg %p39
      %p46 = scmp.eq.s32.totalorder %s18, 1
      %p47 = por %p45, %p46
      %p48 = scmp.ne.s32.totalorder %s40, %s43
      %p49 = scmp.eq.s32.totalorder %s18, 0
      %p50 = por %p48, %p49
      %p51 = scmp.ne.s32.totalorder %s40, %s43
      %p52 = scmp.eq.s32.totalorder %s23, 1
      %p53 = por %p51, %p52
      %p54 = scmp.ne.s32.totalorder %s43, %s44
      %p55 = scmp.eq.s32.totalorder %s23, 0
      %p56 = por %p54, %p55
      %p57 = scmp.ne.s32.totalorder %s43, %s44
      %p58 = scmp.eq.s32.totalorder %s24, 1
      %p59 = por %p57, %p58
      %p61 = scmp.ne.s32.totalorder %s44, %s60
      %p62 = scmp.eq.s32.totalorder %s24, 0
      %p63 = por %p61, %p62
      %s65 = sadd.s32 %s64, 1
      %p68 = scmp.eq.s32.totalorder %s18, 1
      %p69 = scmp.ne.s32.totalorder %s64, %s66
      %p70 = scmp.eq.s32.totalorder %s18, 0
      %p71 = por %p69, %p70
      %p72 = scmp.ne.s32.totalorder %s64, %s66
      %p73 = scmp.eq.s32.totalorder %s23, 1
      %p74 = por %p72, %p73
      %p75 = scmp.ne.s32.totalorder %s66, %s67
      %p76 = scmp.eq.s32.totalorder %s23, 0
      %p77 = por %p75, %p76
      %p78 = scmp.ne.s32.totalorder %s66, %s67
      %p79 = scmp.eq.s32.totalorder %s24, 1
      %p80 = por %p78, %p79
      %p82 = scmp.ne.s32.totalorder %s67, %s81
      %p83 = scmp.eq.s32.totalorder %s24, 0
      %p84 = por %p82, %p83
      %s86 = sadd.s32 %s85, 1
      %p89 = scmp.eq.s32.totalorder %s18, 1
      %p90 = scmp.ne.s32.totalorder %s85, %s87
      %p91 = scmp.eq.s32.totalorder %s18, 0
      %p92 = por %p90, %p91
      %p93 = scmp.ne.s32.totalorder %s85, %s87
      %p94 = scmp.eq.s32.totalorder %s23, 1
      %p95 = por %p93, %p94
      %p96 = scmp.ne.s32.totalorder %s87, %s88
      %p97 = scmp.eq.s32.totalorder %s23, 0
      %p98 = por %p96, %p97
      %p99 = scmp.ne.s32.totalorder %s87, %s88
      %p100 = scmp.eq.s32.totalorder %s24, 1
      %p101 = por %p99, %p100
      %p103 = scmp.ne.s32.totalorder %s88, %s102
      %p104 = scmp.eq.s32.totalorder %s24, 0
      %p105 = por %p103, %p104
      %s107 = sadd.s32 %s106, 1
      %p110 = scmp.eq.s32.totalorder %s18, 1
      %p111 = scmp.ne.s32.totalorder %s106, %s108
      %p112 = scmp.eq.s32.totalorder %s18, 0
      %p113 = por %p111, %p112
      %p114 = scmp.ne.s32.totalorder %s106, %s108
      %p115 = scmp.eq.s32.totalorder %s23, 1
      %p116 = por %p114, %p115
      %p117 = scmp.ne.s32.totalorder %s108, %s109
      %p118 = scmp.eq.s32.totalorder %s23, 0
      %p119 = por %p117, %p118
      %p120 = scmp.ne.s32.totalorder %s108, %s109
      %p121 = scmp.eq.s32.totalorder %s24, 1
      %p122 = por %p120, %p121
      %p124 = scmp.ne.s32.totalorder %s109, %s123
      %p125 = scmp.eq.s32.totalorder %s24, 0
      %p126 = por %p124, %p125
      %s128 = sadd.s32 %s127, 1
      %p131 = scmp.eq.s32.totalorder %s18, 1
      %p132 = scmp.ne.s32.totalorder %s127, %s129
      %p133 = scmp.eq.s32.totalorder %s18, 0
      %p134 = por %p132, %p133
      %p135 = scmp.ne.s32.totalorder %s127, %s129
      %p136 = scmp.eq.s32.totalorder %s23, 1
      %p137 = por %p135, %p136
      %p138 = scmp.ne.s32.totalorder %s129, %s130
      %p139 = scmp.eq.s32.totalorder %s23, 0
      %p140 = por %p138, %p139
      %p141 = scmp.ne.s32.totalorder %s129, %s130
      %p142 = scmp.eq.s32.totalorder %s24, 1
      %p143 = por %p141, %p142
      %p145 = scmp.ne.s32.totalorder %s130, %s144
      %p146 = scmp.eq.s32.totalorder %s24, 0
      %p147 = por %p145, %p146
      %s149 = sadd.s32 %s148, 1
      %p152 = scmp.eq.s32.totalorder %s18, 1
      %p153 = scmp.ne.s32.totalorder %s148, %s150
      %p154 = scmp.eq.s32.totalorder %s18, 0
      %p155 = por %p153, %p154
      %p156 = scmp.ne.s32.totalorder %s148, %s150
      %p157 = scmp.eq.s32.totalorder %s23, 1
      %p158 = por %p156, %p157
      %p159 = scmp.ne.s32.totalorder %s150, %s151
      %p160 = scmp.eq.s32.totalorder %s23, 0
      %p161 = por %p159, %p160
      %p162 = scmp.ne.s32.totalorder %s150, %s151
      %p163 = scmp.eq.s32.totalorder %s24, 1
      %p164 = por %p162, %p163
      %p166 = scmp.ne.s32.totalorder %s151, %s165
      %p167 = scmp.eq.s32.totalorder %s24, 0
      %p168 = por %p166, %p167
      %s170 = sadd.s32 %s169, 1
      %p173 = scmp.eq.s32.totalorder %s18, 1
      %p174 = scmp.ne.s32.totalorder %s169, %s171
      %p175 = scmp.eq.s32.totalorder %s18, 0
      %p176 = por %p174, %p175
      %p177 = scmp.ne.s32.totalorder %s169, %s171
      %p178 = scmp.eq.s32.totalorder %s23, 1
      %p179 = por %p177, %p178
      %p180 = scmp.ne.s32.totalorder %s171, %s172
      %p181 = scmp.eq.s32.totalorder %s23, 0
      %p182 = por %p180, %p181
      %p183 = scmp.ne.s32.totalorder %s171, %s172
      %p184 = scmp.eq.s32.totalorder %s24, 1
      %p185 = por %p183, %p184
      %p187 = scmp.ne.s32.totalorder %s172, %s186
      %p188 = scmp.eq.s32.totalorder %s24, 0
      %p189 = por %p187, %p188
      %s191 = sadd.s32 %s190, 1
      %p194 = scmp.eq.s32.totalorder %s18, 1
      %p195 = scmp.ne.s32.totalorder %s190, %s192
      %p196 = scmp.eq.s32.totalorder %s18, 0
      %p197 = por %p195, %p196
      %p198 = scmp.ne.s32.totalorder %s190, %s192
      %p199 = scmp.eq.s32.totalorder %s23, 1
      %p200 = por %p198, %p199
      %p201 = scmp.ne.s32.totalorder %s192, %s193
      %p202 = scmp.eq.s32.totalorder %s23, 0
      %p203 = por %p201, %p202
      %p204 = scmp.ne.s32.totalorder %s192, %s193
      %p205 = scmp.eq.s32.totalorder %s24, 1
      %p206 = por %p204, %p205
      %p208 = scmp.ne.s32.totalorder %s193, %s207
      %p209 = scmp.eq.s32.totalorder %s24, 0
      %p210 = por %p208, %p209
      %s212 = sadd.s32 %s211, 1
      %p215 = scmp.eq.s32.totalorder %s18, 1
      %p216 = scmp.ne.s32.totalorder %s211, %s213
      %p217 = scmp.eq.s32.totalorder %s18, 0
      %p218 = por %p216, %p217
      %p219 = scmp.ne.s32.totalorder %s211, %s213
      %p220 = scmp.eq.s32.totalorder %s23, 1
      %p221 = por %p219, %p220
      %p222 = scmp.ne.s32.totalorder %s213, %s214
      %p223 = scmp.eq.s32.totalorder %s23, 0
      %p224 = por %p222, %p223
      %p225 = scmp.ne.s32.totalorder %s213, %s214
      %p226 = scmp.eq.s32.totalorder %s24, 1
      %p227 = por %p225, %p226
      %p229 = scmp.ne.s32.totalorder %s214, %s228
      %p230 = scmp.eq.s32.totalorder %s24, 0
      %p231 = por %p229, %p230
      %s232 = ssub.s32 %s25, %s37
      %s233 = ssub.s32 %s26, %s33
      %s234 = sor.u32 %s232, %s233
      %p235 = scmp.eq.s32.totalorder %s234, 0
      %s237 = sadd.s32 %s236, 1
      %s238 = scalar_select %p235, %s236, %s237
      %p241 = pneg %p235
      %p242 = scmp.eq.s32.totalorder %s18, 1
      %p243 = por %p241, %p242
      %p244 = scmp.ne.s32.totalorder %s236, %s239
      %p245 = scmp.eq.s32.totalorder %s18, 0
      %p246 = por %p244, %p245
      %p247 = scmp.ne.s32.totalorder %s236, %s239
      %p248 = scmp.eq.s32.totalorder %s23, 1
      %p249 = por %p247, %p248
      %p250 = scmp.ne.s32.totalorder %s239, %s240
      %p251 = scmp.eq.s32.totalorder %s23, 0
      %p252 = por %p250, %p251
      %p253 = scmp.ne.s32.totalorder %s239, %s240
      %p254 = scmp.eq.s32.totalorder %s24, 1
      %p255 = por %p253, %p254
      %p257 = scmp.ne.s32.totalorder %s240, %s256
      %p258 = scmp.eq.s32.totalorder %s24, 0
      %p259 = por %p257, %p258
      %p260 = scmp.le.s32.totalorder 1, %s18
      %p261 = scmp.lt.s32.totalorder %s18, 3
      %p262 = pnand %p260, %p261
      %p263 = pneg %p262
      // Predicated region
      $region9: #{tpu_custom_call.1} parent=5 // pred_check
        _
      $region10: #{tpu_custom_call.1} parent=5 // pred_check_branch
        %265 = sbr.rel (%p262) target = $region12
      $region11: #{tpu_custom_call.1} parent=5 // pred_region
        %s266 = ssub.s32 %s18, 1
        // Predicated region
        $region13: #{tpu_custom_call.1} parent=11 // pred_check
          %p267 = pneg %p77
        $region14: #{tpu_custom_call.1} parent=11 // pred_check_branch
          %269 = sbr.rel (%p267) target = $region16
        $region15: #{tpu_custom_call.1} parent=11 // pred_region
          _
        $region16: #{tpu_custom_call.1} parent=11 // pred_fallthru
          _
        // Predicated region
        $region17: #{tpu_custom_call.1} parent=11 // pred_check
          %p270 = pneg %p98
        $region18: #{tpu_custom_call.1} parent=11 // pred_check_branch
          %272 = sbr.rel (%p270) target = $region20
        $region19: #{tpu_custom_call.1} parent=11 // pred_region
          _
        $region20: #{tpu_custom_call.1} parent=11 // pred_fallthru
          _
        // Predicated region
        $region21: #{tpu_custom_call.1} parent=11 // pred_check
          %p273 = pneg %p119
        $region22: #{tpu_custom_call.1} parent=11 // pred_check_branch
          %275 = sbr.rel (%p273) target = $region24
        $region23: #{tpu_custom_call.1} parent=11 // pred_region
          _
        $region24: #{tpu_custom_call.1} parent=11 // pred_fallthru
          _
        // Predicated region
        $region25: #{tpu_custom_call.1} parent=11 // pred_check
          %p276 = pneg %p140
        $region26: #{tpu_custom_call.1} parent=11 // pred_check_branch
          %278 = sbr.rel (%p276) target = $region28
        $region27: #{tpu_custom_call.1} parent=11 // pred_region
          _
        $region28: #{tpu_custom_call.1} parent=11 // pred_fallthru
          _
        // Predicated region
        $region29: #{tpu_custom_call.1} parent=11 // pred_check
          %p279 = pneg %p161
        $region30: #{tpu_custom_call.1} parent=11 // pred_check_branch
          %281 = sbr.rel (%p279) target = $region32
        $region31: #{tpu_custom_call.1} parent=11 // pred_region
          _
        $region32: #{tpu_custom_call.1} parent=11 // pred_fallthru
          _
        // Predicated region
        $region33: #{tpu_custom_call.1} parent=11 // pred_check
          %p282 = pneg %p182
        $region34: #{tpu_custom_call.1} parent=11 // pred_check_branch
          %284 = sbr.rel (%p282) target = $region36
        $region35: #{tpu_custom_call.1} parent=11 // pred_region
          _
        $region36: #{tpu_custom_call.1} parent=11 // pred_fallthru
          _
        // Predicated region
        $region37: #{tpu_custom_call.1} parent=11 // pred_check
          %p285 = pneg %p203
        $region38: #{tpu_custom_call.1} parent=11 // pred_check_branch
          %287 = sbr.rel (%p285) target = $region40
        $region39: #{tpu_custom_call.1} parent=11 // pred_region
          _
        $region40: #{tpu_custom_call.1} parent=11 // pred_fallthru
          _
        // Predicated region
        $region41: #{tpu_custom_call.1} parent=11 // pred_check
          %p288 = pneg %p224
        $region42: #{tpu_custom_call.1} parent=11 // pred_check_branch
          %290 = sbr.rel (%p288) target = $region44
        $region43: #{tpu_custom_call.1} parent=11 // pred_region
          _
        $region44: #{tpu_custom_call.1} parent=11 // pred_fallthru
          _
      $region12: #{tpu_custom_call.1} parent=5 // pred_fallthru
        _
      %p291 = scmp.lt.s32.totalorder %s18, 2
      // Predicated region
      $region45: #{tpu_custom_call.1} parent=5 // pred_check
        %p292 = pneg %p291
      $region46: #{tpu_custom_call.1} parent=5 // pred_check_branch
        %294 = sbr.rel (%p292) target = $region48
      $region47: #{tpu_custom_call.1} parent=5 // pred_region
        // Predicated region
        $region49: #{tpu_custom_call.1} parent=47 // pred_check
          %p295 = pneg %p50
        $region50: #{tpu_custom_call.1} parent=47 // pred_check_branch
          %297 = sbr.rel (%p295) target = $region52
        $region51: #{tpu_custom_call.1} parent=47 // pred_region
          %p298 = scmp.lt.s32.totalorder %s25, 1
          %s299 = scalar_select %p298, %s25, 1
          %s300 = smul.addr %s299, 8
          %s301 = scalar_lea.vmem %s0, %s300
        $region52: #{tpu_custom_call.1} parent=47 // pred_fallthru
          _
      $region48: #{tpu_custom_call.1} parent=5 // pred_fallthru
        _
      %p302 = scmp.le.s32.totalorder 1, %s18
      %p303 = scmp.lt.s32.totalorder %s18, 3
      %p304 = pnand %p302, %p303
      %p305 = pneg %p304
      // Predicated region
      $region53: #{tpu_custom_call.1} parent=5 // pred_check
        _
      $region54: #{tpu_custom_call.1} parent=5 // pred_check_branch
        %307 = sbr.rel (%p304) target = $region56
      $region55: #{tpu_custom_call.1} parent=5 // pred_region
        %s308 = ssub.s32 %s18, 1
        %p309 = scmp.lt.s32.totalorder %s27, 1
        %s310 = scalar_select %p309, %s27, 1
        %s311 = smul.addr %s310, 8
        %s312 = scalar_lea.vmem %s0, %s311
        %p313 = pneg %p56
        %p314 = pneg %p53
        %p315 = pneg %p77
        %p316 = pneg %p74
        %p317 = pneg %p98
        %p318 = pneg %p95
        %p319 = pneg %p119
        %p320 = pneg %p116
        %p321 = pneg %p140
        %p322 = pneg %p137
        %p323 = pneg %p161
        %p324 = pneg %p158
        %p325 = pneg %p182
        %p326 = pneg %p179
        %p327 = pneg %p203
        %p328 = pneg %p200
        %p329 = pneg %p224
        %p330 = pneg %p221
        %p331 = pneg %p252
        %p332 = pneg %p249
        %s333 = sand.u32 %s239, 1
        %s334 = scalar_lea.sflag [#allocation6], %s333
        %s335 = sand.u32 %s239, 1
        %s336 = smul.addr %s335, 8
        %s337 = scalar_lea.vmem [#allocation5], %s336
        %p338 = scmp.lt.s32.totalorder %s27, 1
        %s339 = scalar_select %p338, %s27, 1
        %s340 = smul.addr %s339, 8
        %s341 = scalar_lea.vmem %s0, %s340
        %p343 = scmp.eq.s32.totalorder %s28, 0
        // Predicated region
        $region57: #{tpu_custom_call.1} parent=55 // pred_check
          %p344 = pneg %p343
        $region58: #{tpu_custom_call.1} parent=55 // pred_check_branch
          %346 = sbr.rel (%p344) target = $region60
        $region59: #{tpu_custom_call.1} parent=55 // pred_region
          %v347 = vld [vmem:[%s341] sm:$0xff]
          %vm348 = vcmask 261120
          %v349 = vsel %vm348, %v347, 0.0
          %350 = vadd.xlane.f32.xlu0 %v349
          %v351 = vpop.xlane.xlu0 %350
          %v352 = vrcp.pop 32.0
          %v353 = vmul.f32 %v351, %v352
          %v354 = vsub.f32 %v347, %v353
          %v355 = vmul.f32 %v354, %v354
          %v356 = vsel %vm348, %v355, 0.0
          %357 = vadd.xlane.f32.xlu0 %v356
          %v358 = vpop.xlane.xlu0 %357
          %v359 = vmul.f32 %v358, %v352
          %v360 = vadd.f32 %v359, 1e-05
          %v361 = vrsqrt.pop %v360
          %v362 = vmul.f32 %v354, %v361
          %v363 = vld [vmem:[%s1] sm:$0x1]
          %v365 = vlaneseq
          %v366 = vshrl.u32 %v365, 7
          %v367 = vsub.s32 0, %v366
          %v368 = vrot.slane %v363, %v367
          %v370 = vmul.f32 %v362, %v368
          %v371 = vld [vmem:[%s2] sm:$0x1]
          %v373 = vlaneseq
          %v374 = vshrl.u32 %v373, 7
          %v375 = vsub.s32 0, %v374
          %v376 = vrot.slane %v371, %v375
          %v378 = vadd.f32 %v370, %v376
          %v379 = vpack.c.bf16 %v378, %v378
          %vm380 = vcmask 257024
          %381 = vst.msk [vmem:[#allocation2] sm:$0xf] %vm380, %v379
          %v382 = vld [vmem:[%s4] sm:$0xf]
          %v383 = vld [vmem:[%s4 + $0x4] sm:$0xf]
          %v384 = vld [vmem:[%s4 + $0x8] sm:$0xf]
          %v385 = vld [vmem:[%s4 + $0xc] sm:$0xf]
          %v386 = vld [vmem:[%s4 + $0x10] sm:$0xf]
          %v387 = vld [vmem:[%s4 + $0x14] sm:$0xf]
          %v388 = vld [vmem:[%s4 + $0x18] sm:$0xf]
          %v389 = vld [vmem:[%s4 + $0x1c] sm:$0xf]
          %v390 = vld [vmem:[%s7] sm:$0x1]
          %v392 = vlaneseq
          %v393 = vshrl.u32 %v392, 7
          %v394 = vsub.s32 0, %v393
          %v395 = vrot.slane %v390, %v394
          %v405 = vunpack.c.l.b16 %v382
          %v406 = vunpack.c.l.b16 %v383
          %v407 = vunpack.c.l.b16 %v384
          %v408 = vunpack.c.l.b16 %v385
          %v409 = vunpack.c.l.b16 %v386
          %v410 = vunpack.c.l.b16 %v387
          %v411 = vunpack.c.l.b16 %v388
          %v412 = vunpack.c.l.b16 %v389
          %v413 = vpack.c.b16 %v406, %v405
          %v414 = vpack.c.b16 %v408, %v407
          %v415 = vpack.c.b16 %v410, %v409
          %v416 = vpack.c.b16 %v412, %v411
          %v418 = vsel %vm348, %v379, 0
          %v421 = vsel %vm348, %v413, 0
          %v424 = vsel %vm348, %v414, 0
          %v427 = vsel %vm348, %v415, 0
          %v430 = vsel %vm348, %v416, 0
          %432 = vmatprep.subr.bf16.mxu0 0
          %433 = vmatpush1.bf16.xpose.msra.mxu0 %v421
          %434 = vmatprep.subr.bf16.mxu0 0
          %435 = vmatpush1.bf16.xpose.msra.mxu0 %v424
          %436 = vmatprep.subr.bf16.mxu0 0
          %437 = vmatpush1.bf16.xpose.msra.mxu0 %v427
          %438 = vmatprep.subr.bf16.mxu0 0
          %439 = vmatpush1.bf16.xpose.msra.mxu0 %v430
          %440 = vmatprep.subr.bf16.mxu0 0
          %441 = vmatpush1.bf16.xpose.msra.mxu0 0
          %442 = vmatprep.subr.bf16.mxu0 0
          %443 = vmatpush1.bf16.xpose.msra.mxu0 0
          %444 = vmatprep.subr.bf16.mxu0 0
          %445 = vmatpush1.bf16.xpose.msra.mxu0 0
          %446 = vmatprep.subr.bf16.mxu0 0
          %447 = vmatpush1.bf16.xpose.msra.mxu0 0
          %448 = vmatprep.subr.bf16.mxu0 0
          %449 = vmatpush1.bf16.xpose.msra.mxu0 0
          %450 = vmatprep.subr.bf16.mxu0 0
          %451 = vmatpush1.bf16.xpose.msra.mxu0 0
          %452 = vmatprep.subr.bf16.mxu0 0
          %453 = vmatpush1.bf16.xpose.msra.mxu0 0
          %454 = vmatprep.subr.bf16.mxu0 0
          %455 = vmatpush1.bf16.xpose.msra.mxu0 0
          %456 = vmatprep.subr.bf16.mxu0 0
          %457 = vmatpush1.bf16.xpose.msra.mxu0 0
          %458 = vmatprep.subr.bf16.mxu0 0
          %459 = vmatpush1.bf16.xpose.msra.mxu0 0
          %460 = vmatprep.subr.bf16.mxu0 0
          %461 = vmatpush1.bf16.xpose.msra.mxu0 0
          %462 = vmatprep.subr.bf16.mxu0 0
          %463 = vmatpush1.bf16.xpose.msra.mxu0 0
          %464 = vmatprep.mubr.bf16.mxu0 0
          %465 = vmatmul.mubr.bf16.gmra.mrb[0].mxu0 %v418
          %v466 = vpop.f32.mrb[0].mxu0
          %v467 = vadd.f32 %v395, %v466
          %v468 = vpop.f32.mrb[0].mxu0
          %v469 = vpop.f32.mrb[0].mxu0
          %v470 = vpop.f32.mrb[0].mxu0
          %471 = vdwg.mxu0
          %v472 = vpack.c.bf16 %v467, %v467
          %vm473 = vcmask 60416
          %474 = vst.msk [vmem:[#allocation3] sm:$0xf] %vm473, %v472
          %v476 = vunpack.c.l.b16 %v472
          %v477 = vpack.c.b16 %v476, %v476
          %478 = vrot.lane.b32.xlu0 %v477, 96
          %v479 = vpop.permute.xlu0 %478
          %481 = vst.msk [vmem:[#allocation4] sm:$0xf] %vm473, %v479
          %482 = vrot.lane.b32.xlu0 %v477, 120
          %v483 = vpop.permute.xlu0 %482
          %s485 = scalar_lea.vmem [#allocation3], 4
          %486 = vst.msk [vmem:[%s485] sm:$0xf] %vm473, %v483
          %487 = vrot.lane.b32.xlu0 %v477, 88
          %v488 = vpop.permute.xlu0 %487
          %s490 = scalar_lea.vmem [#allocation4], 4
          %491 = vst.msk [vmem:[%s490] sm:$0xf] %vm473, %v488
          %492 = vrot.lane.b32.xlu0 %v477, 112
          %v493 = vpop.permute.xlu0 %492
          %s495 = scalar_lea.vmem [#allocation3], 8
          %496 = vst.msk [vmem:[%s495] sm:$0xf] %vm473, %v493
          %497 = vrot.lane.b32.xlu0 %v477, 80
          %v498 = vpop.permute.xlu0 %497
          %s500 = scalar_lea.vmem [#allocation4], 8
          %501 = vst.msk [vmem:[%s500] sm:$0xf] %vm473, %v498
          %502 = vrot.lane.b32.xlu0 %v477, 104
          %v503 = vpop.permute.xlu0 %502
          %s505 = scalar_lea.vmem [#allocation3], 12
          %506 = vst.msk [vmem:[%s505] sm:$0xf] %vm473, %v503
          %507 = vrot.lane.b32.xlu0 %v477, 72
          %v508 = vpop.permute.xlu0 %507
          %s510 = scalar_lea.vmem [#allocation4], 12
          %511 = vst.msk [vmem:[%s510] sm:$0xf] %vm473, %v508
        $region60: #{tpu_custom_call.1} parent=55 // pred_fallthru
          _
        %s512 = smul.u32 %s28, 8
        %s513 = sshra.s32 %s512, 3
        %s514 = sand.u32 %s512, 7
        %s515 = smul.addr %s513, 4
        %s516 = scalar_lea.vmem [#allocation2], %s515
        %v517 = vld [vmem:[%s516] sm:$0xf]
        %v518 = vld [vmem:[%s3] sm:$0xf]
        %v519 = vld [vmem:[%s3 + $0x4] sm:$0xf]
        %v520 = vld [vmem:[%s3 + $0x8] sm:$0xf]
        %v521 = vld [vmem:[%s3 + $0xc] sm:$0xf]
        %v522 = vld [vmem:[%s6] sm:$0x1]
        %v524 = vlaneseq
        %v525 = vshrl.u32 %v524, 7
        %v526 = vsub.s32 0, %v525
        %v527 = vrot.slane %v522, %v526
        %v533 = vunpack.c.l.b16 %v518
        %v534 = vunpack.c.l.b16 %v519
        %v535 = vunpack.c.l.b16 %v520
        %v536 = vunpack.c.l.b16 %v521
        %v537 = vpack.c.b16 %v534, %v533
        %v538 = vpack.c.b16 %v536, %v535
        %vm539 = vcmask 261120
        %v541 = vsel %vm539, %v517, 0
        %v544 = vsel %vm539, %v537, 0
        %v547 = vsel %vm539, %v538, 0
        %549 = vmatprep.subr.bf16.mxu0 0
        %550 = vmatpush1.bf16.xpose.msra.mxu0 %v544
        %551 = vmatprep.subr.bf16.mxu0 0
        %552 = vmatpush1.bf16.xpose.msra.mxu0 %v547
        %553 = vmatprep.subr.bf16.mxu0 0
        %554 = vmatpush1.bf16.xpose.msra.mxu0 0
        %555 = vmatprep.subr.bf16.mxu0 0
        %556 = vmatpush1.bf16.xpose.msra.mxu0 0
        %557 = vmatprep.subr.bf16.mxu0 0
        %558 = vmatpush1.bf16.xpose.msra.mxu0 0
        %559 = vmatprep.subr.bf16.mxu0 0
        %560 = vmatpush1.bf16.xpose.msra.mxu0 0
        %561 = vmatprep.subr.bf16.mxu0 0
        %562 = vmatpush1.bf16.xpose.msra.mxu0 0
        %563 = vmatprep.subr.bf16.mxu0 0
        %564 = vmatpush1.bf16.xpose.msra.mxu0 0
        %565 = vmatprep.subr.bf16.mxu0 0
        %566 = vmatpush1.bf16.xpose.msra.mxu0 0
        %567 = vmatprep.subr.bf16.mxu0 0
        %568 = vmatpush1.bf16.xpose.msra.mxu0 0
        %569 = vmatprep.subr.bf16.mxu0 0
        %570 = vmatpush1.bf16.xpose.msra.mxu0 0
        %571 = vmatprep.subr.bf16.mxu0 0
        %572 = vmatpush1.bf16.xpose.msra.mxu0 0
        %573 = vmatprep.subr.bf16.mxu0 0
        %574 = vmatpush1.bf16.xpose.msra.mxu0 0
        %575 = vmatprep.subr.bf16.mxu0 0
        %576 = vmatpush1.bf16.xpose.msra.mxu0 0
        %577 = vmatprep.subr.bf16.mxu0 0
        %578 = vmatpush1.bf16.xpose.msra.mxu0 0
        %579 = vmatprep.subr.bf16.mxu0 0
        %580 = vmatpush1.bf16.xpose.msra.mxu0 0
        %581 = vmatprep.mubr.bf16.mxu0 0
        %582 = vmatmul.mubr.bf16.gmra.mrb[0].mxu0 %v541
        %v583 = vpop.f32.mrb[0].mxu0
        %v584 = vadd.f32 %v527, %v583
        %v585 = vpop.f32.mrb[0].mxu0
        %v586 = vpop.f32.mrb[0].mxu0
        %v587 = vpop.f32.mrb[0].mxu0
        %588 = vdwg.mxu0
        %v589 = vpack.c.bf16 %v584, %v584
        %v590 = vld [vmem:[#allocation3] sm:$0xf]
        %v591 = vld [vmem:[#allocation4] sm:$0xf]
        %vm592 = vcmask 64512
        %v594 = vsel %vm592, %v589, 0
        %v597 = vsel %vm592, %v590, 0
        %599 = vmatprep.subr.bf16.mxu0 0
        %600 = vmatpush1.bf16.xpose.msra.mxu0 %v597
        %601 = vmatprep.subr.bf16.mxu0 0
        %602 = vmatpush1.bf16.xpose.msra.mxu0 0
        %603 = vmatprep.subr.bf16.mxu0 0
        %604 = vmatpush1.bf16.xpose.msra.mxu0 0
        %605 = vmatprep.subr.bf16.mxu0 0
        %606 = vmatpush1.bf16.xpose.msra.mxu0 0
        %607 = vmatprep.subr.bf16.mxu0 0
        %608 = vmatpush1.bf16.xpose.msra.mxu0 0
        %609 = vmatprep.subr.bf16.mxu0 0
        %610 = vmatpush1.bf16.xpose.msra.mxu0 0
        %611 = vmatprep.subr.bf16.mxu0 0
        %612 = vmatpush1.bf16.xpose.msra.mxu0 0
        %613 = vmatprep.subr.bf16.mxu0 0
        %614 = vmatpush1.bf16.xpose.msra.mxu0 0
        %615 = vmatprep.subr.bf16.mxu0 0
        %616 = vmatpush1.bf16.xpose.msra.mxu0 0
        %617 = vmatprep.subr.bf16.mxu0 0
        %618 = vmatpush1.bf16.xpose.msra.mxu0 0
        %619 = vmatprep.subr.bf16.mxu0 0
        %620 = vmatpush1.bf16.xpose.msra.mxu0 0
        %621 = vmatprep.subr.bf16.mxu0 0
        %622 = vmatpush1.bf16.xpose.msra.mxu0 0
        %623 = vmatprep.subr.bf16.mxu0 0
        %624 = vmatpush1.bf16.xpose.msra.mxu0 0
        %625 = vmatprep.subr.bf16.mxu0 0
        %626 = vmatpush1.bf16.xpose.msra.mxu0 0
        %627 = vmatprep.subr.bf16.mxu0 0
        %628 = vmatpush1.bf16.xpose.msra.mxu0 0
        %629 = vmatprep.subr.bf16.mxu0 0
        %630 = vmatpush1.bf16.xpose.msra.mxu0 0
        %631 = vmatprep.mubr.bf16.mxu0 0
        %632 = vmatmul.mubr.bf16.gmra.mrb[0].mxu0 %v594
        %v633 = vpop.f32.mrb[0].mxu0
        %v634 = vadd.f32 0.0, %v633
        %v635 = vpop.f32.mrb[0].mxu0
        %v636 = vpop.f32.mrb[0].mxu0
        %v637 = vpop.f32.mrb[0].mxu0
        %638 = vdwg.mxu0
        %v639 = vsel %vm592, %v634, -inf
        %640 = vmax.xlane.f32.xlu0 %v639
        %v641 = vpop.xlane.xlu0 %640
        %v642 = vsub.f32 %v634, %v641
        %v643 = vmul.f32 %v642, 1.442695
        %v644 = vpow.pop %v643
        %v645 = vsel %vm592, %v644, 0.0
        %646 = vadd.xlane.f32.xlu0 %v645
        %v647 = vpop.xlane.xlu0 %646
        %v648 = vrcp.pop %v647
        %v649 = vpack.c.bf16 %v644, %v644
        %v651 = vsel %vm592, %v649, 0
        %vm653 = vcmask 1043456
        %v655 = vsel %vm653, %v591, 0
        %657 = vmatprep.subr.bf16.mxu0 0
        %658 = vmatpush1.bf16.msra.mxu0 %v655
        %659 = vmatprep.subr.bf16.mxu0 0
        %660 = vmatpush1.bf16.msra.mxu0 0
        %661 = vmatprep.subr.bf16.mxu0 0
        %662 = vmatpush1.bf16.msra.mxu0 0
        %663 = vmatprep.subr.bf16.mxu0 0
        %664 = vmatpush1.bf16.msra.mxu0 0
        %665 = vmatprep.subr.bf16.mxu0 0
        %666 = vmatpush1.bf16.msra.mxu0 0
        %667 = vmatprep.subr.bf16.mxu0 0
        %668 = vmatpush1.bf16.msra.mxu0 0
        %669 = vmatprep.subr.bf16.mxu0 0
        %670 = vmatpush1.bf16.msra.mxu0 0
        %671 = vmatprep.subr.bf16.mxu0 0
        %672 = vmatpush1.bf16.msra.mxu0 0
        %673 = vmatprep.subr.bf16.mxu0 0
        %674 = vmatpush1.bf16.msra.mxu0 0
        %675 = vmatprep.subr.bf16.mxu0 0
        %676 = vmatpush1.bf16.msra.mxu0 0
        %677 = vmatprep.subr.bf16.mxu0 0
        %678 = vmatpush1.bf16.msra.mxu0 0
        %679 = vmatprep.subr.bf16.mxu0 0
        %680 = vmatpush1.bf16.msra.mxu0 0
        %681 = vmatprep.subr.bf16.mxu0 0
        %682 = vmatpush1.bf16.msra.mxu0 0
        %683 = vmatprep.subr.bf16.mxu0 0
        %684 = vmatpush1.bf16.msra.mxu0 0
        %685 = vmatprep.subr.bf16.mxu0 0
        %686 = vmatpush1.bf16.msra.mxu0 0
        %687 = vmatprep.subr.bf16.mxu0 0
        %688 = vmatpush1.bf16.msra.mxu0 0
        %689 = vmatprep.mubr.bf16.mxu0 0
        %690 = vmatmul.mubr.bf16.gmra.mrb[0].mxu0 %v651
        %v691 = vpop.f32.mrb[0].mxu0
        %v692 = vadd.f32 0.0, %v691
        %v693 = vpop.f32.mrb[0].mxu0
        %v694 = vpop.f32.mrb[0].mxu0
        %v695 = vpop.f32.mrb[0].mxu0
        %696 = vdwg.mxu0
        %v697 = vmul.f32 %v692, %v648
        %v698 = vpack.c.bf16 %v697, %v697
        %s699 = scalar_lea.vmem [#allocation3], 4
        %v700 = vld [vmem:[%s699] sm:$0xf]
        %s701 = scalar_lea.vmem [#allocation4], 4
        %v702 = vld [vmem:[%s701] sm:$0xf]
        %704 = vrot.lane.b32.xlu0 %v589, 120
        %v705 = vpop.permute.xlu0 %704
        %v707 = vsel %vm592, %v705, 0
        %v710 = vsel %vm592, %v700, 0
        %712 = vmatprep.subr.bf16.mxu0 0
        %713 = vmatpush1.bf16.xpose.msra.mxu0 %v710
        %714 = vmatprep.subr.bf16.mxu0 0
        %715 = vmatpush1.bf16.xpose.msra.mxu0 0
        %716 = vmatprep.subr.bf16.mxu0 0
        %717 = vmatpush1.bf16.xpose.msra.mxu0 0
        %718 = vmatprep.subr.bf16.mxu0 0
        %719 = vmatpush1.bf16.xpose.msra.mxu0 0
        %720 = vmatprep.subr.bf16.mxu0 0
        %721 = vmatpush1.bf16.xpose.msra.mxu0 0
        %722 = vmatprep.subr.bf16.mxu0 0
        %723 = vmatpush1.bf16.xpose.msra.mxu0 0
        %724 = vmatprep.subr.bf16.mxu0 0
        %725 = vmatpush1.bf16.xpose.msra.mxu0 0
        %726 = vmatprep.subr.bf16.mxu0 0
        %727 = vmatpush1.bf16.xpose.msra.mxu0 0
        %728 = vmatprep.subr.bf16.mxu0 0
        %729 = vmatpush1.bf16.xpose.msra.mxu0 0
        %730 = vmatprep.subr.bf16.mxu0 0
        %731 = vmatpush1.bf16.xpose.msra.mxu0 0
        %732 = vmatprep.subr.bf16.mxu0 0
        %733 = vmatpush1.bf16.xpose.msra.mxu0 0
        %734 = vmatprep.subr.bf16.mxu0 0
        %735 = vmatpush1.bf16.xpose.msra.mxu0 0
        %736 = vmatprep.subr.bf16.mxu0 0
        %737 = vmatpush1.bf16.xpose.msra.mxu0 0
        %738 = vmatprep.subr.bf16.mxu0 0
        %739 = vmatpush1.bf16.xpose.msra.mxu0 0
        %740 = vmatprep.subr.bf16.mxu0 0
        %741 = vmatpush1.bf16.xpose.msra.mxu0 0
        %742 = vmatprep.subr.bf16.mxu0 0
        %743 = vmatpush1.bf16.xpose.msra.mxu0 0
        %744 = vmatprep.mubr.bf16.mxu0 0
        %745 = vmatmul.mubr.bf16.gmra.mrb[0].mxu0 %v707
        %v746 = vpop.f32.mrb[0].mxu0
        %v747 = vadd.f32 0.0, %v746
        %v748 = vpop.f32.mrb[0].mxu0
        %v749 = vpop.f32.mrb[0].mxu0
        %v750 = vpop.f32.mrb[0].mxu0
        %751 = vdwg.mxu0
        %v752 = vsel %vm592, %v747, -inf
        %753 = vmax.xlane.f32.xlu0 %v752
        %v754 = vpop.xlane.xlu0 %753
        %v755 = vsub.f32 %v747, %v754
        %v756 = vmul.f32 %v755, 1.442695
        %v757 = vpow.pop %v756
        %v758 = vsel %vm592, %v757, 0.0
        %759 = vadd.xlane.f32.xlu0 %v758
        %v760 = vpop.xlane.xlu0 %759
        %v761 = vrcp.pop %v760
        %v762 = vpack.c.bf16 %v757, %v757
        %v764 = vsel %vm592, %v762, 0
        %v767 = vsel %vm653, %v702, 0
        %769 = vmatprep.subr.bf16.mxu0 0
        %770 = vmatpush1.bf16.msra.mxu0 %v767
        %771 = vmatprep.subr.bf16.mxu0 0
        %772 = vmatpush1.bf16.msra.mxu0 0
        %773 = vmatprep.subr.bf16.mxu0 0
        %774 = vmatpush1.bf16.msra.mxu0 0
        %775 = vmatprep.subr.bf16.mxu0 0
        %776 = vmatpush1.bf16.msra.mxu0 0
        %777 = vmatprep.subr.bf16.mxu0 0
        %778 = vmatpush1.bf16.msra.mxu0 0
        %779 = vmatprep.subr.bf16.mxu0 0
        %780 = vmatpush1.bf16.msra.mxu0 0
        %781 = vmatprep.subr.bf16.mxu0 0
        %782 = vmatpush1.bf16.msra.mxu0 0
        %783 = vmatprep.subr.bf16.mxu0 0
        %784 = vmatpush1.bf16.msra.mxu0 0
        %785 = vmatprep.subr.bf16.mxu0 0
        %786 = vmatpush1.bf16.msra.mxu0 0
        %787 = vmatprep.subr.bf16.mxu0 0
        %788 = vmatpush1.bf16.msra.mxu0 0
        %789 = vmatprep.subr.bf16.mxu0 0
        %790 = vmatpush1.bf16.msra.mxu0 0
        %791 = vmatprep.subr.bf16.mxu0 0
        %792 = vmatpush1.bf16.msra.mxu0 0
        %793 = vmatprep.subr.bf16.mxu0 0
        %794 = vmatpush1.bf16.msra.mxu0 0
        %795 = vmatprep.subr.bf16.mxu0 0
        %796 = vmatpush1.bf16.msra.mxu0 0
        %797 = vmatprep.subr.bf16.mxu0 0
        %798 = vmatpush1.bf16.msra.mxu0 0
        %799 = vmatprep.subr.bf16.mxu0 0
        %800 = vmatpush1.bf16.msra.mxu0 0
        %801 = vmatprep.mubr.bf16.mxu0 0
        %802 = vmatmul.mubr.bf16.gmra.mrb[0].mxu0 %v764
        %v803 = vpop.f32.mrb[0].mxu0
        %v804 = vadd.f32 0.0, %v803
        %v805 = vpop.f32.mrb[0].mxu0
        %v806 = vpop.f32.mrb[0].mxu0
        %v807 = vpop.f32.mrb[0].mxu0
        %808 = vdwg.mxu0
        %v809 = vmul.f32 %v804, %v761
        %v810 = vpack.c.bf16 %v809, %v809
        %s811 = scalar_lea.vmem [#allocation3], 8
        %v812 = vld [vmem:[%s811] sm:$0xf]
        %s813 = scalar_lea.vmem [#allocation4], 8
        %v814 = vld [vmem:[%s813] sm:$0xf]
        %815 = vrot.lane.b32.xlu0 %v589, 112
        %v816 = vpop.permute.xlu0 %815
        %v818 = vsel %vm592, %v816, 0
        %v821 = vsel %vm592, %v812, 0
        %823 = vmatprep.subr.bf16.mxu0 0
        %824 = vmatpush1.bf16.xpose.msra.mxu0 %v821
        %825 = vmatprep.subr.bf16.mxu0 0
        %826 = vmatpush1.bf16.xpose.msra.mxu0 0
        %827 = vmatprep.subr.bf16.mxu0 0
        %828 = vmatpush1.bf16.xpose.msra.mxu0 0
        %829 = vmatprep.subr.bf16.mxu0 0
        %830 = vmatpush1.bf16.xpose.msra.mxu0 0
        %831 = vmatprep.subr.bf16.mxu0 0
        %832 = vmatpush1.bf16.xpose.msra.mxu0 0
        %833 = vmatprep.subr.bf16.mxu0 0
        %834 = vmatpush1.bf16.xpose.msra.mxu0 0
        %835 = vmatprep.subr.bf16.mxu0 0
        %836 = vmatpush1.bf16.xpose.msra.mxu0 0
        %837 = vmatprep.subr.bf16.mxu0 0
        %838 = vmatpush1.bf16.xpose.msra.mxu0 0
        %839 = vmatprep.subr.bf16.mxu0 0
        %840 = vmatpush1.bf16.xpose.msra.mxu0 0
        %841 = vmatprep.subr.bf16.mxu0 0
        %842 = vmatpush1.bf16.xpose.msra.mxu0 0
        %843 = vmatprep.subr.bf16.mxu0 0
        %844 = vmatpush1.bf16.xpose.msra.mxu0 0
        %845 = vmatprep.subr.bf16.mxu0 0
        %846 = vmatpush1.bf16.xpose.msra.mxu0 0
        %847 = vmatprep.subr.bf16.mxu0 0
        %848 = vmatpush1.bf16.xpose.msra.mxu0 0
        %849 = vmatprep.subr.bf16.mxu0 0
        %850 = vmatpush1.bf16.xpose.msra.mxu0 0
        %851 = vmatprep.subr.bf16.mxu0 0
        %852 = vmatpush1.bf16.xpose.msra.mxu0 0
        %853 = vmatprep.subr.bf16.mxu0 0
        %854 = vmatpush1.bf16.xpose.msra.mxu0 0
        %855 = vmatprep.mubr.bf16.mxu0 0
        %856 = vmatmul.mubr.bf16.gmra.mrb[0].mxu0 %v818
        %v857 = vpop.f32.mrb[0].mxu0
        %v858 = vadd.f32 0.0, %v857
        %v859 = vpop.f32.mrb[0].mxu0
        %v860 = vpop.f32.mrb[0].mxu0
        %v861 = vpop.f32.mrb[0].mxu0
        %862 = vdwg.mxu0
        %v863 = vsel %vm592, %v858, -inf
        %864 = vmax.xlane.f32.xlu0 %v863
        %v865 = vpop.xlane.xlu0 %864
        %v866 = vsub.f32 %v858, %v865
        %v867 = vmul.f32 %v866, 1.442695
        %v868 = vpow.pop %v867
        %v869 = vsel %vm592, %v868, 0.0
        %870 = vadd.xlane.f32.xlu0 %v869
        %v871 = vpop.xlane.xlu0 %870
        %v872 = vrcp.pop %v871
        %v873 = vpack.c.bf16 %v868, %v868
        %v875 = vsel %vm592, %v873, 0
        %v878 = vsel %vm653, %v814, 0
        %880 = vmatprep.subr.bf16.mxu0 0
        %881 = vmatpush1.bf16.msra.mxu0 %v878
        %882 = vmatprep.subr.bf16.mxu0 0
        %883 = vmatpush1.bf16.msra.mxu0 0
        %884 = vmatprep.subr.bf16.mxu0 0
        %885 = vmatpush1.bf16.msra.mxu0 0
        %886 = vmatprep.subr.bf16.mxu0 0
        %887 = vmatpush1.bf16.msra.mxu0 0
        %888 = vmatprep.subr.bf16.mxu0 0
        %889 = vmatpush1.bf16.msra.mxu0 0
        %890 = vmatprep.subr.bf16.mxu0 0
        %891 = vmatpush1.bf16.msra.mxu0 0
        %892 = vmatprep.subr.bf16.mxu0 0
        %893 = vmatpush1.bf16.msra.mxu0 0
        %894 = vmatprep.subr.bf16.mxu0 0
        %895 = vmatpush1.bf16.msra.mxu0 0
        %896 = vmatprep.subr.bf16.mxu0 0
        %897 = vmatpush1.bf16.msra.mxu0 0
        %898 = vmatprep.subr.bf16.mxu0 0
        %899 = vmatpush1.bf16.msra.mxu0 0
        %900 = vmatprep.subr.bf16.mxu0 0
        %901 = vmatpush1.bf16.msra.mxu0 0
        %902 = vmatprep.subr.bf16.mxu0 0
        %903 = vmatpush1.bf16.msra.mxu0 0
        %904 = vmatprep.subr.bf16.mxu0 0
        %905 = vmatpush1.bf16.msra.mxu0 0
        %906 = vmatprep.subr.bf16.mxu0 0
        %907 = vmatpush1.bf16.msra.mxu0 0
        %908 = vmatprep.subr.bf16.mxu0 0
        %909 = vmatpush1.bf16.msra.mxu0 0
        %910 = vmatprep.subr.bf16.mxu0 0
        %911 = vmatpush1.bf16.msra.mxu0 0
        %912 = vmatprep.mubr.bf16.mxu0 0
        %913 = vmatmul.mubr.bf16.gmra.mrb[0].mxu0 %v875
        %v914 = vpop.f32.mrb[0].mxu0
        %v915 = vadd.f32 0.0, %v914
        %v916 = vpop.f32.mrb[0].mxu0
        %v917 = vpop.f32.mrb[0].mxu0
        %v918 = vpop.f32.mrb[0].mxu0
        %919 = vdwg.mxu0
        %v920 = vmul.f32 %v915, %v872
        %v921 = vpack.c.bf16 %v920, %v920
        %s922 = scalar_lea.vmem [#allocation3], 12
        %v923 = vld [vmem:[%s922] sm:$0xf]
        %s924 = scalar_lea.vmem [#allocation4], 12
        %v925 = vld [vmem:[%s924] sm:$0xf]
        %926 = vrot.lane.b32.xlu0 %v589, 104
        %v927 = vpop.permute.xlu0 %926
        %v929 = vsel %vm592, %v927, 0
        %v932 = vsel %vm592, %v923, 0
        %934 = vmatprep.subr.bf16.mxu0 0
        %935 = vmatpush1.bf16.xpose.msra.mxu0 %v932
        %936 = vmatprep.subr.bf16.mxu0 0
        %937 = vmatpush1.bf16.xpose.msra.mxu0 0
        %938 = vmatprep.subr.bf16.mxu0 0
        %939 = vmatpush1.bf16.xpose.msra.mxu0 0
        %940 = vmatprep.subr.bf16.mxu0 0
        %941 = vmatpush1.bf16.xpose.msra.mxu0 0
        %942 = vmatprep.subr.bf16.mxu0 0
        %943 = vmatpush1.bf16.xpose.msra.mxu0 0
        %944 = vmatprep.subr.bf16.mxu0 0
        %945 = vmatpush1.bf16.xpose.msra.mxu0 0
        %946 = vmatprep.subr.bf16.mxu0 0
        %947 = vmatpush1.bf16.xpose.msra.mxu0 0
        %948 = vmatprep.subr.bf16.mxu0 0
        %949 = vmatpush1.bf16.xpose.msra.mxu0 0
        %950 = vmatprep.subr.bf16.mxu0 0
        %951 = vmatpush1.bf16.xpose.msra.mxu0 0
        %952 = vmatprep.subr.bf16.mxu0 0
        %953 = vmatpush1.bf16.xpose.msra.mxu0 0
        %954 = vmatprep.subr.bf16.mxu0 0
        %955 = vmatpush1.bf16.xpose.msra.mxu0 0
        %956 = vmatprep.subr.bf16.mxu0 0
        %957 = vmatpush1.bf16.xpose.msra.mxu0 0
        %958 = vmatprep.subr.bf16.mxu0 0
        %959 = vmatpush1.bf16.xpose.msra.mxu0 0
        %960 = vmatprep.subr.bf16.mxu0 0
        %961 = vmatpush1.bf16.xpose.msra.mxu0 0
        %962 = vmatprep.subr.bf16.mxu0 0
        %963 = vmatpush1.bf16.xpose.msra.mxu0 0
        %964 = vmatprep.subr.bf16.mxu0 0
        %965 = vmatpush1.bf16.xpose.msra.mxu0 0
        %966 = vmatprep.mubr.bf16.mxu0 0
        %967 = vmatmul.mubr.bf16.gmra.mrb[0].mxu0 %v929
        %v968 = vpop.f32.mrb[0].mxu0
        %v969 = vadd.f32 0.0, %v968
        %v970 = vpop.f32.mrb[0].mxu0
        %v971 = vpop.f32.mrb[0].mxu0
        %v972 = vpop.f32.mrb[0].mxu0
        %973 = vdwg.mxu0
        %v974 = vsel %vm592, %v969, -inf
        %975 = vmax.xlane.f32.xlu0 %v974
        %v976 = vpop.xlane.xlu0 %975
        %v977 = vsub.f32 %v969, %v976
        %v978 = vmul.f32 %v977, 1.442695
        %v979 = vpow.pop %v978
        %v980 = vsel %vm592, %v979, 0.0
        %981 = vadd.xlane.f32.xlu0 %v980
        %v982 = vpop.xlane.xlu0 %981
        %v983 = vrcp.pop %v982
        %v984 = vpack.c.bf16 %v979, %v979
        %v986 = vsel %vm592, %v984, 0
        %v989 = vsel %vm653, %v925, 0
        %991 = vmatprep.subr.bf16.mxu0 0
        %992 = vmatpush1.bf16.msra.mxu0 %v989
        %993 = vmatprep.subr.bf16.mxu0 0
        %994 = vmatpush1.bf16.msra.mxu0 0
        %995 = vmatprep.subr.bf16.mxu0 0
        %996 = vmatpush1.bf16.msra.mxu0 0
        %997 = vmatprep.subr.bf16.mxu0 0
        %998 = vmatpush1.bf16.msra.mxu0 0
        %999 = vmatprep.subr.bf16.mxu0 0
        %1000 = vmatpush1.bf16.msra.mxu0 0
        %1001 = vmatprep.subr.bf16.mxu0 0
        %1002 = vmatpush1.bf16.msra.mxu0 0
        %1003 = vmatprep.subr.bf16.mxu0 0
        %1004 = vmatpush1.bf16.msra.mxu0 0
        %1005 = vmatprep.subr.bf16.mxu0 0
        %1006 = vmatpush1.bf16.msra.mxu0 0
        %1007 = vmatprep.subr.bf16.mxu0 0
        %1008 = vmatpush1.bf16.msra.mxu0 0
        %1009 = vmatprep.subr.bf16.mxu0 0
        %1010 = vmatpush1.bf16.msra.mxu0 0
        %1011 = vmatprep.subr.bf16.mxu0 0
        %1012 = vmatpush1.bf16.msra.mxu0 0
        %1013 = vmatprep.subr.bf16.mxu0 0
        %1014 = vmatpush1.bf16.msra.mxu0 0
        %1015 = vmatprep.subr.bf16.mxu0 0
        %1016 = vmatpush1.bf16.msra.mxu0 0
        %1017 = vmatprep.subr.bf16.mxu0 0
        %1018 = vmatpush1.bf16.msra.mxu0 0
        %1019 = vmatprep.subr.bf16.mxu0 0
        %1020 = vmatpush1.bf16.msra.mxu0 0
        %1021 = vmatprep.subr.bf16.mxu0 0
        %1022 = vmatpush1.bf16.msra.mxu0 0
        %1023 = vmatprep.mubr.bf16.mxu0 0
        %1024 = vmatmul.mubr.bf16.gmra.mrb[0].mxu0 %v986
        %v1025 = vpop.f32.mrb[0].mxu0
        %v1026 = vadd.f32 0.0, %v1025
        %v1027 = vpop.f32.mrb[0].mxu0
        %v1028 = vpop.f32.mrb[0].mxu0
        %v1029 = vpop.f32.mrb[0].mxu0
        %1030 = vdwg.mxu0
        %v1031 = vmul.f32 %v1026, %v983
        %v1032 = vpack.c.bf16 %v1031, %v1031
        %1034 = vrot.lane.b32.xlu0 %v810, 8
        %v1035 = vpop.permute.xlu0 %1034
        %1037 = vrot.lane.b32.xlu0 %v921, 16
        %v1038 = vpop.permute.xlu0 %1037
        %1040 = vrot.lane.b32.xlu0 %v1032, 24
        %v1041 = vpop.permute.xlu0 %1040
        %v1044 = vsel %vm592, %v698, %v1035
        %vm1045 = vcmask 130048
        %v1047 = vsel %vm1045, %v1044, %v1038
        %vm1048 = vcmask 195584
        %v1050 = vsel %vm1048, %v1047, %v1041
        %v1051 = vld [vmem:[%s5] sm:$0xf]
        %v1052 = vld [vmem:[%s5 + $0x4] sm:$0xf]
        %v1053 = vld [vmem:[%s5 + $0x8] sm:$0xf]
        %v1054 = vld [vmem:[%s5 + $0xc] sm:$0xf]
        %v1055 = vld [vmem:[%s8] sm:$0x1]
        %v1057 = vlaneseq
        %v1058 = vshrl.u32 %v1057, 7
        %v1059 = vsub.s32 0, %v1058
        %v1060 = vrot.slane %v1055, %v1059
        %v1066 = vunpack.c.l.b16 %v1051
        %v1067 = vunpack.c.l.b16 %v1052
        %v1068 = vunpack.c.l.b16 %v1053
        %v1069 = vunpack.c.l.b16 %v1054
        %v1070 = vpack.c.b16 %v1067, %v1066
        %v1071 = vpack.c.b16 %v1069, %v1068
        %v1072 = vsel %vm539, %v1050, 0
        %v1075 = vsel %vm539, %v1070, 0
        %v1078 = vsel %vm539, %v1071, 0
        %1080 = vmatprep.subr.bf16.mxu0 0
        %1081 = vmatpush1.bf16.xpose.msra.mxu0 %v1075
        %1082 = vmatprep.subr.bf16.mxu0 0
        %1083 = vmatpush1.bf16.xpose.msra.mxu0 %v1078
        %1084 = vmatprep.subr.bf16.mxu0 0
        %1085 = vmatpush1.bf16.xpose.msra.mxu0 0
        %1086 = vmatprep.subr.bf16.mxu0 0
        %1087 = vmatpush1.bf16.xpose.msra.mxu0 0
        %1088 = vmatprep.subr.bf16.mxu0 0
        %1089 = vmatpush1.bf16.xpose.msra.mxu0 0
        %1090 = vmatprep.subr.bf16.mxu0 0
        %1091 = vmatpush1.bf16.xpose.msra.mxu0 0
        %1092 = vmatprep.subr.bf16.mxu0 0
        %1093 = vmatpush1.bf16.xpose.msra.mxu0 0
        %1094 = vmatprep.subr.bf16.mxu0 0
        %1095 = vmatpush1.bf16.xpose.msra.mxu0 0
        %1096 = vmatprep.subr.bf16.mxu0 0
        %1097 = vmatpush1.bf16.xpose.msra.mxu0 0
        %1098 = vmatprep.subr.bf16.mxu0 0
        %1099 = vmatpush1.bf16.xpose.msra.mxu0 0
        %1100 = vmatprep.subr.bf16.mxu0 0
        %1101 = vmatpush1.bf16.xpose.msra.mxu0 0
        %1102 = vmatprep.subr.bf16.mxu0 0
        %1103 = vmatpush1.bf16.xpose.msra.mxu0 0
        %1104 = vmatprep.subr.bf16.mxu0 0
        %1105 = vmatpush1.bf16.xpose.msra.mxu0 0
        %1106 = vmatprep.subr.bf16.mxu0 0
        %1107 = vmatpush1.bf16.xpose.msra.mxu0 0
        %1108 = vmatprep.subr.bf16.mxu0 0
        %1109 = vmatpush1.bf16.xpose.msra.mxu0 0
        %1110 = vmatprep.subr.bf16.mxu0 0
        %1111 = vmatpush1.bf16.xpose.msra.mxu0 0
        %1112 = vmatprep.mubr.bf16.mxu0 0
        %1113 = vmatmul.mubr.bf16.gmra.mrb[0].mxu0 %v1072
        %v1114 = vpop.f32.mrb[0].mxu0
        %v1115 = vadd.f32 %v1060, %v1114
        %v1116 = vpop.f32.mrb[0].mxu0
        %v1117 = vpop.f32.mrb[0].mxu0
        %v1118 = vpop.f32.mrb[0].mxu0
        %1119 = vdwg.mxu0
        %1120 = vst.msk [vmem:[%s337] sm:$0xff] %vm539, %v1115
        %s1121 = sand.u32 %s239, 1
        %s1122 = scalar_lea.sflag [#allocation6], %s1121
        %s1123 = sand.u32 %s239, 1
        %s1124 = smul.addr %s1123, 8
        %s1125 = scalar_lea.vmem [#allocation5], %s1124
        // Predicated region
        $region61: #{tpu_custom_call.1} parent=55 // pred_check
          %p1126 = pneg %p249
        $region62: #{tpu_custom_call.1} parent=55 // pred_check_branch
          %1128 = sbr.rel (%p1126) target = $region64
        $region63: #{tpu_custom_call.1} parent=55 // pred_region
          %s1130 = ssub.s32 128, 128
          %1131 = vsyncadd %s1122, %s1130
          %s1132 = sadd.s32 %s28, %s27
          %s1133 = smul.addr %s1132, 128
          %s1134 = scalar_lea.hbm %s9, %s1133
          %s1136 = sshll.u32 %s1125, 4
          %s1137 = int_to_ptr.vmem [resolvable:$true] %s1136
          %1139 = dma.vmem_to_hbm [thread:$0]  %s1137, 128, %s1134, %s1122
        $region64: #{tpu_custom_call.1} parent=55 // pred_fallthru
          _
      $region56: #{tpu_custom_call.1} parent=5 // pred_fallthru
        _
      %p1140 = scmp.le.s32.totalorder 2, %s18
      // Predicated region
      $region65: #{tpu_custom_call.1} parent=5 // pred_check
        %p1141 = pneg %p1140
      $region66: #{tpu_custom_call.1} parent=5 // pred_check_branch
        %1143 = sbr.rel (%p1141) target = $region68
      $region67: #{tpu_custom_call.1} parent=5 // pred_region
        %s1144 = ssub.s32 %s18, 2
        // Predicated region
        $region69: #{tpu_custom_call.1} parent=67 // pred_check
          %p1145 = pneg %p255
        $region70: #{tpu_custom_call.1} parent=67 // pred_check_branch
          %1147 = sbr.rel (%p1145) target = $region72
        $region71: #{tpu_custom_call.1} parent=67 // pred_region
          %s1148 = sand.u32 %s240, 1
          %s1149 = scalar_lea.sflag [#allocation6], %s1148
          %s1150 = sand.u32 %s240, 1
          %s1151 = smul.addr %s1150, 8
          %s1152 = scalar_lea.vmem [#allocation5], %s1151
          %1153 = dma.done %s1149, 128
        $region72: #{tpu_custom_call.1} parent=67 // pred_fallthru
          _
      $region68: #{tpu_custom_call.1} parent=5 // pred_fallthru
        _
    $region6: #{tpu_custom_call.1} parent=1 // loop_footer
      %s22 = sadd.s32 1, %s18
    $region7: #{tpu_custom_call.1} parent=1 // loop_footer_branch
      %17 = sbr.rel target = $region3
    $region8: #{tpu_custom_call.1} parent=1 // loop_exit
      _
    %1154 = vsyncpa [#allocation6], 1
    %s1155 = scalar_lea.sflag [#allocation6], 1
    %1156 = vsyncpa %s1155, 1

</llo_original>
